<compile_context>
chip_gen: v7x
topology: tpu7x:2x2x1
jax: 0.10.0
libtpu: 0.0.40
codegen_flags: <defaults>
</compile_context>

<pallas_src>
import jax
import jax.numpy as jnp
from jax.experimental import pallas as pl
from jax.experimental.pallas import tpu as pltpu


def lstm_tagger_kernel(idx_ref,     # VMEM (seq, 1) int32 token ids
                       table_ref,   # VMEM (V, 4H)  emb @ W_ih0 (g-cols pre-scaled x2)
                       w_hh0_ref,   # VMEM (H, 4H)  layer-0 recurrent weights (g x2)
                       b0_ref,      # VMEM (1, 4H)  b_ih0 + b_hh0 (g x2)
                       w_ih1_ref,   # VMEM (H, 4H)  layer-1 input weights (g x2)
                       w_hh1_ref,   # VMEM (H, 4H)  layer-1 recurrent weights (g x2)
                       b1_ref,      # VMEM (1, 4H)  b_ih1 + b_hh1 (g x2)
                       out_ref,     # VMEM (seq, H) log_softmax scores
                       hs_ref):     # VMEM scratch (seq, H) layer-1 hidden states
    seq = out_ref.shape[0]
    H = w_hh0_ref.shape[0]
    V = table_ref.shape[0]

    table = table_ref[...]
    w_hh0 = w_hh0_ref[...]
    b0 = b0_ref[...]
    w_ih1 = w_ih1_ref[...]
    w_hh1 = w_hh1_ref[...]
    b1 = b1_ref[...]

    # ---- hoisted layer-0 input path: ONE batched (seq, V) @ (V, 4H) matmul
    #      (embedding already folded into the weights), off the serial chain.
    idx = idx_ref[...]                                               # (seq, 1)
    onehot = (jax.lax.broadcasted_iota(jnp.int32, (seq, V), 1)
              == idx).astype(jnp.float32)                            # (seq, V)
    gates0_x = jnp.dot(onehot, table,
                       preferred_element_type=jnp.float32) + b0      # (seq, 4H)

    def cell_elementwise(gates, c):
        # Single EUP pass (sigmoid) over the full (1, 4H) vreg; the candidate
        # gate uses tanh(x) = 2*sigmoid(2x) - 1 with the x2 pre-folded into
        # the weights/biases, so no per-step tanh on the gate vector.
        sg = jax.nn.sigmoid(gates)
        i = sg[:, 0 * H:1 * H]
        f = sg[:, 1 * H:2 * H]
        g = 2.0 * sg[:, 2 * H:3 * H] - 1.0
        o = sg[:, 3 * H:4 * H]
        c_new = f * c + i * g
        h_new = o * jnp.tanh(c_new)
        return h_new, c_new

    # ---- fully unrolled recurrence (seq is small and static).  Per step the
    #      serial chain carries: h0@W_hh0 -> cell0 -> h0@W_ih1 (+ g1_rec that
    #      was issued last step) -> cell1.  h1@W_hh1 for the NEXT step is
    #      issued immediately so it overlaps the next step's layer-0 work.
    zeros = jnp.zeros((1, H), jnp.float32)
    h0, c0, h1, c1 = zeros, zeros, zeros, zeros
    g1_rec = jnp.zeros((1, 4 * H), jnp.float32)       # h1_{-1} @ W_hh1 == 0
    for t in range(seq):
        # layer 0: precomputed input gates + recurrent projection
        g0 = gates0_x[t:t + 1, :] + jnp.dot(
            h0, w_hh0, preferred_element_type=jnp.float32)           # (1, 4H)
        h0, c0 = cell_elementwise(g0, c0)

        # layer 1: only h0@W_ih1 depends on this step; the recurrent half was
        # issued at the end of the previous step.
        g1 = jnp.dot(h0, w_ih1,
                     preferred_element_type=jnp.float32) + g1_rec + b1
        h1, c1 = cell_elementwise(g1, c1)

        hs_ref[pl.ds(t, 1), :] = h1                                  # (1, H) row

        if t + 1 < seq:
            g1_rec = jnp.dot(h1, w_hh1,
                             preferred_element_type=jnp.float32)     # for t+1

    # ---- batched log_softmax over all timesteps + single output store. ------
    hs = hs_ref[...]                                                 # (seq, H)
    m = jnp.max(hs, axis=-1, keepdims=True)
    e = jnp.exp(hs - m)
    out_ref[...] = hs - m - jnp.log(jnp.sum(e, axis=-1, keepdims=True))


def lstm_tagger(indices, params):
    seq = int(indices.shape[0])
    H = int(params["w_hh0"].shape[0])

    # One-time parameter prep (host/XLA side, outside the latency-bound kernel):
    #  * fold the embedding into the layer-0 input weights -> (V, 4H) table,
    #  * scale the g-gate (candidate) columns of every weight/bias by 2 so the
    #    kernel can evaluate tanh via a rescaled sigmoid.
    gate_scale = jnp.concatenate([
        jnp.ones((H,), jnp.float32), jnp.ones((H,), jnp.float32),
        2.0 * jnp.ones((H,), jnp.float32), jnp.ones((H,), jnp.float32)])
    table = jnp.dot(params["emb"], params["w_ih0"],
                    precision=jax.lax.Precision.HIGHEST) * gate_scale
    w_hh0 = params["w_hh0"] * gate_scale
    b0 = params["b0"] * gate_scale
    w_ih1 = params["w_ih1"] * gate_scale
    w_hh1 = params["w_hh1"] * gate_scale
    b1 = params["b1"] * gate_scale

    idx2d = indices.astype(jnp.int32).reshape(seq, 1)

    # TODO(synk): for batched sentences on v7x, add a leading "parallel" grid
    # axis over batch so both TensorCores get work; batch==1 here per the spec.
    return pl.pallas_call(
        lstm_tagger_kernel,
        out_shape=jax.ShapeDtypeStruct((seq, H), jnp.float32),
        in_specs=[pl.BlockSpec(memory_space=pltpu.VMEM)] * 7,
        out_specs=pl.BlockSpec(memory_space=pltpu.VMEM),
        scratch_shapes=[pltpu.VMEM((seq, H), jnp.float32)],
    )(idx2d, table, w_hh0, b0, w_ih1, w_hh1, b1)


def init_params(key, embedding_dim, hidden_dim, vocab_size):
    """Deterministic synthetic init matching the PyTorch module's shapes."""
    H, E, V = hidden_dim, embedding_dim, vocab_size
    ks = jax.random.split(key, 9)
    bound = 1.0 / jnp.sqrt(jnp.float32(H))
    u = lambda k, shape: jax.random.uniform(k, shape, jnp.float32, -bound, bound)
    params = {
        # nn.Embedding default init ~ N(0, 1)
        "emb": jax.random.normal(ks[0], (V, E), jnp.float32),
        # layer 0: weight_ih_l0 (4H, E) stored transposed as (E, 4H), etc.
        "w_ih0": u(ks[1], (E, 4 * H)),
        "w_hh0": u(ks[2], (H, 4 * H)),
        "b0": u(ks[3], (1, 4 * H)) + u(ks[4], (1, 4 * H)),  # b_ih + b_hh
        # layer 1
        "w_ih1": u(ks[5], (H, 4 * H)),
        "w_hh1": u(ks[6], (H, 4 * H)),
        "b1": u(ks[7], (1, 4 * H)) + u(ks[8], (1, 4 * H)),
    }
    return params


def ref_lstm_tagger(indices, params):
    """Pure-JAX reference of MyModule.forward (zero initial hidden state)."""
    H = int(params["w_hh0"].shape[0])
    hp = jax.lax.Precision.HIGHEST
    x_all = params["emb"][indices]                                   # (seq, E)

    def cell(xt, h, c, w_ih, w_hh, b):
        g = (jnp.dot(xt, w_ih, precision=hp)
             + jnp.dot(h, w_hh, precision=hp) + b)                   # (1, 4H)
        i = jax.nn.sigmoid(g[:, 0 * H:1 * H])
        f = jax.nn.sigmoid(g[:, 1 * H:2 * H])
        gg = jnp.tanh(g[:, 2 * H:3 * H])
        o = jax.nn.sigmoid(g[:, 3 * H:4 * H])
        c_new = f * c + i * gg
        return o * jnp.tanh(c_new), c_new

    def step(carry, x_t):
        h0, c0, h1, c1 = carry
        h0, c0 = cell(x_t[None, :], h0, c0,
                      params["w_ih0"], params["w_hh0"], params["b0"])
        h1, c1 = cell(h0, h1, c1,
                      params["w_ih1"], params["w_hh1"], params["b1"])
        return (h0, c0, h1, c1), h1[0]

    zeros = jnp.zeros((1, H), jnp.float32)
    _, hs = jax.lax.scan(step, (zeros, zeros, zeros, zeros), x_all)
    return jax.nn.log_softmax(hs, axis=-1)


if __name__ == "__main__":
    EMBEDDING_DIM = 32
    HIDDEN_DIM = 32
    VOCAB_SIZE = 16
    SEQ_LEN = 8

    key = jax.random.PRNGKey(0)
    k_param, k_sent = jax.random.split(key)
    params = init_params(k_param, EMBEDDING_DIM, HIDDEN_DIM, VOCAB_SIZE)
    sentence = jax.random.randint(k_sent, (SEQ_LEN,), 0, VOCAB_SIZE, jnp.int32)

    tag_scores = jax.block_until_ready(lstm_tagger(sentence, params))

    # Sanity: shape (seq, H), finite, each row a valid log-distribution.
    assert tag_scores.shape == (SEQ_LEN, HIDDEN_DIM)
    assert bool(jnp.all(jnp.isfinite(tag_scores)))
    row_sums = jnp.sum(jnp.exp(tag_scores), axis=1)
    assert bool(jnp.allclose(row_sums, 1.0, atol=1e-4))

    # Functional check against a pure-JAX reference (tolerance covers MXU
    # precision and the exact tanh(x)=2*sigmoid(2x)-1 / emb-fold rewrites).
    ref = jax.block_until_ready(ref_lstm_tagger(sentence, params))
    max_diff = float(jnp.max(jnp.abs(tag_scores - ref)))
    assert max_diff < 3e-2, f"kernel/reference mismatch: {max_diff}"

    print("KERNEL_OK")
</pallas_src>

<mosaic_0001>
module attributes {stable_mosaic.version = 11 : i64} {
  func.func @lstm_tagger_kernel(%arg0: memref<8x1xi32, #tpu.memory_space<vmem>>, %arg1: memref<16x128xf32, #tpu.memory_space<vmem>>, %arg2: memref<32x128xf32, #tpu.memory_space<vmem>>, %arg3: memref<1x128xf32, #tpu.memory_space<vmem>>, %arg4: memref<32x128xf32, #tpu.memory_space<vmem>>, %arg5: memref<32x128xf32, #tpu.memory_space<vmem>>, %arg6: memref<1x128xf32, #tpu.memory_space<vmem>>, %arg7: memref<8x32xf32, #tpu.memory_space<vmem>>, %arg8: memref<8x32xf32, #tpu.memory_space<vmem>>) attributes {dimension_semantics = [], scalar_prefetch = 0 : i64, scratch_operands = 1 : i64, tpu.core_type = #tpu.core_type<tc>} {
    %c0 = arith.constant 0 : index
    %c0_0 = arith.constant 0 : index
    %0 = vector.load %arg1[%c0, %c0_0] : memref<16x128xf32, #tpu.memory_space<vmem>>, vector<16x128xf32>
    %c0_1 = arith.constant 0 : index
    %c0_2 = arith.constant 0 : index
    %1 = vector.load %arg2[%c0_1, %c0_2] : memref<32x128xf32, #tpu.memory_space<vmem>>, vector<32x128xf32>
    %c0_3 = arith.constant 0 : index
    %c0_4 = arith.constant 0 : index
    %2 = vector.load %arg3[%c0_3, %c0_4] : memref<1x128xf32, #tpu.memory_space<vmem>>, vector<1x128xf32>
    %c0_5 = arith.constant 0 : index
    %c0_6 = arith.constant 0 : index
    %3 = vector.load %arg4[%c0_5, %c0_6] : memref<32x128xf32, #tpu.memory_space<vmem>>, vector<32x128xf32>
    %c0_7 = arith.constant 0 : index
    %c0_8 = arith.constant 0 : index
    %4 = vector.load %arg5[%c0_7, %c0_8] : memref<32x128xf32, #tpu.memory_space<vmem>>, vector<32x128xf32>
    %c0_9 = arith.constant 0 : index
    %c0_10 = arith.constant 0 : index
    %5 = vector.load %arg6[%c0_9, %c0_10] : memref<1x128xf32, #tpu.memory_space<vmem>>, vector<1x128xf32>
    %c0_11 = arith.constant 0 : index
    %c0_12 = arith.constant 0 : index
    %6 = vector.load %arg0[%c0_11, %c0_12] : memref<8x1xi32, #tpu.memory_space<vmem>>, vector<8x1xi32>
    %7 = tpu.iota {dimensions = array<i32: 1>} : vector<8x16xi32>
    %8 = vector.broadcast %6 : vector<8x1xi32> to vector<8x16xi32>
    %9 = arith.cmpi eq, %7, %8 : vector<8x16xi32>
    %10 = arith.extui %9 : vector<8x16xi1> to vector<8x16xi32>
    %11 = arith.sitofp %10 : vector<8x16xi32> to vector<8x16xf32>
    %cst = arith.constant dense<0.000000e+00> : vector<8x128xf32>
    %12 = tpu.matmul %11, %0, %cst {dimension_numbers = #tpu.dot_dimension_numbers<[1], [0], [0], [1], [0, 0, 1, 1], [], []>} : vector<8x16xf32>, vector<16x128xf32>, vector<8x128xf32> -> vector<8x128xf32>
    %13 = vector.broadcast %2 : vector<1x128xf32> to vector<8x128xf32>
    %14 = arith.addf %12, %13 : vector<8x128xf32>
    %cst_13 = arith.constant 0.000000e+00 : f32
    %15 = vector.broadcast %cst_13 : f32 to vector<1x32xf32>
    %cst_14 = arith.constant 0.000000e+00 : f32
    %16 = vector.broadcast %cst_14 : f32 to vector<1x128xf32>
    %17 = vector.extract_strided_slice %14 {offsets = [0, 0], sizes = [1, 128], strides = [1, 1]} : vector<8x128xf32> to vector<1x128xf32>
    %cst_15 = arith.constant dense<0.000000e+00> : vector<1x128xf32>
    %18 = tpu.matmul %15, %1, %cst_15 {dimension_numbers = #tpu.dot_dimension_numbers<[1], [0], [0], [1], [0, 0, 1, 1], [], []>} : vector<1x32xf32>, vector<32x128xf32>, vector<1x128xf32> -> vector<1x128xf32>
    %19 = arith.addf %17, %18 : vector<1x128xf32>
    %20 = arith.negf %19 : vector<1x128xf32>
    %21 = math.exp %20 : vector<1x128xf32>
    %cst_16 = arith.constant 1.000000e+00 : f32
    %22 = vector.broadcast %cst_16 : f32 to vector<1x128xf32>
    %23 = arith.addf %22, %21 : vector<1x128xf32>
    %24 = arith.divf %22, %23 : vector<1x128xf32>
    %25 = vector.extract_strided_slice %24 {offsets = [0, 0], sizes = [1, 32], strides = [1, 1]} : vector<1x128xf32> to vector<1x32xf32>
    %26 = vector.extract_strided_slice %24 {offsets = [0, 32], sizes = [1, 32], strides = [1, 1]} : vector<1x128xf32> to vector<1x32xf32>
    %27 = vector.extract_strided_slice %24 {offsets = [0, 64], sizes = [1, 32], strides = [1, 1]} : vector<1x128xf32> to vector<1x32xf32>
    %cst_17 = arith.constant 2.000000e+00 : f32
    %28 = vector.broadcast %cst_17 : f32 to vector<1x32xf32>
    %29 = arith.mulf %28, %27 : vector<1x32xf32>
    %cst_18 = arith.constant 1.000000e+00 : f32
    %30 = vector.broadcast %cst_18 : f32 to vector<1x32xf32>
    %31 = arith.subf %29, %30 : vector<1x32xf32>
    %32 = vector.extract_strided_slice %24 {offsets = [0, 96], sizes = [1, 32], strides = [1, 1]} : vector<1x128xf32> to vector<1x32xf32>
    %33 = arith.mulf %26, %15 : vector<1x32xf32>
    %34 = arith.mulf %25, %31 : vector<1x32xf32>
    %35 = arith.addf %33, %34 : vector<1x32xf32>
    %36 = math.tanh %35 : vector<1x32xf32>
    %37 = arith.mulf %32, %36 : vector<1x32xf32>
    %cst_19 = arith.constant dense<0.000000e+00> : vector<1x128xf32>
    %38 = tpu.matmul %37, %3, %cst_19 {dimension_numbers = #tpu.dot_dimension_numbers<[1], [0], [0], [1], [0, 0, 1, 1], [], []>} : vector<1x32xf32>, vector<32x128xf32>, vector<1x128xf32> -> vector<1x128xf32>
    %39 = arith.addf %38, %16 : vector<1x128xf32>
    %40 = arith.addf %39, %5 : vector<1x128xf32>
    %41 = arith.negf %40 : vector<1x128xf32>
    %42 = math.exp %41 : vector<1x128xf32>
    %cst_20 = arith.constant 1.000000e+00 : f32
    %43 = vector.broadcast %cst_20 : f32 to vector<1x128xf32>
    %44 = arith.addf %43, %42 : vector<1x128xf32>
    %45 = arith.divf %43, %44 : vector<1x128xf32>
    %46 = vector.extract_strided_slice %45 {offsets = [0, 0], sizes = [1, 32], strides = [1, 1]} : vector<1x128xf32> to vector<1x32xf32>
    %47 = vector.extract_strided_slice %45 {offsets = [0, 32], sizes = [1, 32], strides = [1, 1]} : vector<1x128xf32> to vector<1x32xf32>
    %48 = vector.extract_strided_slice %45 {offsets = [0, 64], sizes = [1, 32], strides = [1, 1]} : vector<1x128xf32> to vector<1x32xf32>
    %cst_21 = arith.constant 2.000000e+00 : f32
    %49 = vector.broadcast %cst_21 : f32 to vector<1x32xf32>
    %50 = arith.mulf %49, %48 : vector<1x32xf32>
    %cst_22 = arith.constant 1.000000e+00 : f32
    %51 = vector.broadcast %cst_22 : f32 to vector<1x32xf32>
    %52 = arith.subf %50, %51 : vector<1x32xf32>
    %53 = vector.extract_strided_slice %45 {offsets = [0, 96], sizes = [1, 32], strides = [1, 1]} : vector<1x128xf32> to vector<1x32xf32>
    %54 = arith.mulf %47, %15 : vector<1x32xf32>
    %55 = arith.mulf %46, %52 : vector<1x32xf32>
    %56 = arith.addf %54, %55 : vector<1x32xf32>
    %57 = math.tanh %56 : vector<1x32xf32>
    %58 = arith.mulf %53, %57 : vector<1x32xf32>
    %c0_23 = arith.constant 0 : index
    %c0_24 = arith.constant 0 : index
    %59 = vector.load %arg8[%c0_23, %c0_24] : memref<8x32xf32, #tpu.memory_space<vmem>>, vector<1x32xf32>
    tpu.vector_store %arg8[%c0_23, %c0_24], %58 {strides = array<i32>} : memref<8x32xf32, #tpu.memory_space<vmem>>, vector<1x32xf32>,
    %cst_25 = arith.constant dense<0.000000e+00> : vector<1x128xf32>
    %60 = tpu.matmul %58, %4, %cst_25 {dimension_numbers = #tpu.dot_dimension_numbers<[1], [0], [0], [1], [0, 0, 1, 1], [], []>} : vector<1x32xf32>, vector<32x128xf32>, vector<1x128xf32> -> vector<1x128xf32>
    %61 = vector.extract_strided_slice %14 {offsets = [1, 0], sizes = [1, 128], strides = [1, 1]} : vector<8x128xf32> to vector<1x128xf32>
    %cst_26 = arith.constant dense<0.000000e+00> : vector<1x128xf32>
    %62 = tpu.matmul %37, %1, %cst_26 {dimension_numbers = #tpu.dot_dimension_numbers<[1], [0], [0], [1], [0, 0, 1, 1], [], []>} : vector<1x32xf32>, vector<32x128xf32>, vector<1x128xf32> -> vector<1x128xf32>
    %63 = arith.addf %61, %62 : vector<1x128xf32>
    %64 = arith.negf %63 : vector<1x128xf32>
    %65 = math.exp %64 : vector<1x128xf32>
    %cst_27 = arith.constant 1.000000e+00 : f32
    %66 = vector.broadcast %cst_27 : f32 to vector<1x128xf32>
    %67 = arith.addf %66, %65 : vector<1x128xf32>
    %68 = arith.divf %66, %67 : vector<1x128xf32>
    %69 = vector.extract_strided_slice %68 {offsets = [0, 0], sizes = [1, 32], strides = [1, 1]} : vector<1x128xf32> to vector<1x32xf32>
    %70 = vector.extract_strided_slice %68 {offsets = [0, 32], sizes = [1, 32], strides = [1, 1]} : vector<1x128xf32> to vector<1x32xf32>
    %71 = vector.extract_strided_slice %68 {offsets = [0, 64], sizes = [1, 32], strides = [1, 1]} : vector<1x128xf32> to vector<1x32xf32>
    %cst_28 = arith.constant 2.000000e+00 : f32
    %72 = vector.broadcast %cst_28 : f32 to vector<1x32xf32>
    %73 = arith.mulf %72, %71 : vector<1x32xf32>
    %cst_29 = arith.constant 1.000000e+00 : f32
    %74 = vector.broadcast %cst_29 : f32 to vector<1x32xf32>
    %75 = arith.subf %73, %74 : vector<1x32xf32>
    %76 = vector.extract_strided_slice %68 {offsets = [0, 96], sizes = [1, 32], strides = [1, 1]} : vector<1x128xf32> to vector<1x32xf32>
    %77 = arith.mulf %70, %35 : vector<1x32xf32>
    %78 = arith.mulf %69, %75 : vector<1x32xf32>
    %79 = arith.addf %77, %78 : vector<1x32xf32>
    %80 = math.tanh %79 : vector<1x32xf32>
    %81 = arith.mulf %76, %80 : vector<1x32xf32>
    %cst_30 = arith.constant dense<0.000000e+00> : vector<1x128xf32>
    %82 = tpu.matmul %81, %3, %cst_30 {dimension_numbers = #tpu.dot_dimension_numbers<[1], [0], [0], [1], [0, 0, 1, 1], [], []>} : vector<1x32xf32>, vector<32x128xf32>, vector<1x128xf32> -> vector<1x128xf32>
    %83 = arith.addf %82, %60 : vector<1x128xf32>
    %84 = arith.addf %83, %5 : vector<1x128xf32>
    %85 = arith.negf %84 : vector<1x128xf32>
    %86 = math.exp %85 : vector<1x128xf32>
    %cst_31 = arith.constant 1.000000e+00 : f32
    %87 = vector.broadcast %cst_31 : f32 to vector<1x128xf32>
    %88 = arith.addf %87, %86 : vector<1x128xf32>
    %89 = arith.divf %87, %88 : vector<1x128xf32>
    %90 = vector.extract_strided_slice %89 {offsets = [0, 0], sizes = [1, 32], strides = [1, 1]} : vector<1x128xf32> to vector<1x32xf32>
    %91 = vector.extract_strided_slice %89 {offsets = [0, 32], sizes = [1, 32], strides = [1, 1]} : vector<1x128xf32> to vector<1x32xf32>
    %92 = vector.extract_strided_slice %89 {offsets = [0, 64], sizes = [1, 32], strides = [1, 1]} : vector<1x128xf32> to vector<1x32xf32>
    %cst_32 = arith.constant 2.000000e+00 : f32
    %93 = vector.broadcast %cst_32 : f32 to vector<1x32xf32>
    %94 = arith.mulf %93, %92 : vector<1x32xf32>
    %cst_33 = arith.constant 1.000000e+00 : f32
    %95 = vector.broadcast %cst_33 : f32 to vector<1x32xf32>
    %96 = arith.subf %94, %95 : vector<1x32xf32>
    %97 = vector.extract_strided_slice %89 {offsets = [0, 96], sizes = [1, 32], strides = [1, 1]} : vector<1x128xf32> to vector<1x32xf32>
    %98 = arith.mulf %91, %56 : vector<1x32xf32>
    %99 = arith.mulf %90, %96 : vector<1x32xf32>
    %100 = arith.addf %98, %99 : vector<1x32xf32>
    %101 = math.tanh %100 : vector<1x32xf32>
    %102 = arith.mulf %97, %101 : vector<1x32xf32>
    %c1 = arith.constant 1 : index
    %c0_34 = arith.constant 0 : index
    %103 = vector.load %arg8[%c1, %c0_34] : memref<8x32xf32, #tpu.memory_space<vmem>>, vector<1x32xf32>
    tpu.vector_store %arg8[%c1, %c0_34], %102 {strides = array<i32>} : memref<8x32xf32, #tpu.memory_space<vmem>>, vector<1x32xf32>,
    %cst_35 = arith.constant dense<0.000000e+00> : vector<1x128xf32>
    %104 = tpu.matmul %102, %4, %cst_35 {dimension_numbers = #tpu.dot_dimension_numbers<[1], [0], [0], [1], [0, 0, 1, 1], [], []>} : vector<1x32xf32>, vector<32x128xf32>, vector<1x128xf32> -> vector<1x128xf32>
    %105 = vector.extract_strided_slice %14 {offsets = [2, 0], sizes = [1, 128], strides = [1, 1]} : vector<8x128xf32> to vector<1x128xf32>
    %cst_36 = arith.constant dense<0.000000e+00> : vector<1x128xf32>
    %106 = tpu.matmul %81, %1, %cst_36 {dimension_numbers = #tpu.dot_dimension_numbers<[1], [0], [0], [1], [0, 0, 1, 1], [], []>} : vector<1x32xf32>, vector<32x128xf32>, vector<1x128xf32> -> vector<1x128xf32>
    %107 = arith.addf %105, %106 : vector<1x128xf32>
    %108 = arith.negf %107 : vector<1x128xf32>
    %109 = math.exp %108 : vector<1x128xf32>
    %cst_37 = arith.constant 1.000000e+00 : f32
    %110 = vector.broadcast %cst_37 : f32 to vector<1x128xf32>
    %111 = arith.addf %110, %109 : vector<1x128xf32>
    %112 = arith.divf %110, %111 : vector<1x128xf32>
    %113 = vector.extract_strided_slice %112 {offsets = [0, 0], sizes = [1, 32], strides = [1, 1]} : vector<1x128xf32> to vector<1x32xf32>
    %114 = vector.extract_strided_slice %112 {offsets = [0, 32], sizes = [1, 32], strides = [1, 1]} : vector<1x128xf32> to vector<1x32xf32>
    %115 = vector.extract_strided_slice %112 {offsets = [0, 64], sizes = [1, 32], strides = [1, 1]} : vector<1x128xf32> to vector<1x32xf32>
    %cst_38 = arith.constant 2.000000e+00 : f32
    %116 = vector.broadcast %cst_38 : f32 to vector<1x32xf32>
    %117 = arith.mulf %116, %115 : vector<1x32xf32>
    %cst_39 = arith.constant 1.000000e+00 : f32
    %118 = vector.broadcast %cst_39 : f32 to vector<1x32xf32>
    %119 = arith.subf %117, %118 : vector<1x32xf32>
    %120 = vector.extract_strided_slice %112 {offsets = [0, 96], sizes = [1, 32], strides = [1, 1]} : vector<1x128xf32> to vector<1x32xf32>
    %121 = arith.mulf %114, %79 : vector<1x32xf32>
    %122 = arith.mulf %113, %119 : vector<1x32xf32>
    %123 = arith.addf %121, %122 : vector<1x32xf32>
    %124 = math.tanh %123 : vector<1x32xf32>
    %125 = arith.mulf %120, %124 : vector<1x32xf32>
    %cst_40 = arith.constant dense<0.000000e+00> : vector<1x128xf32>
    %126 = tpu.matmul %125, %3, %cst_40 {dimension_numbers = #tpu.dot_dimension_numbers<[1], [0], [0], [1], [0, 0, 1, 1], [], []>} : vector<1x32xf32>, vector<32x128xf32>, vector<1x128xf32> -> vector<1x128xf32>
    %127 = arith.addf %126, %104 : vector<1x128xf32>
    %128 = arith.addf %127, %5 : vector<1x128xf32>
    %129 = arith.negf %128 : vector<1x128xf32>
    %130 = math.exp %129 : vector<1x128xf32>
    %cst_41 = arith.constant 1.000000e+00 : f32
    %131 = vector.broadcast %cst_41 : f32 to vector<1x128xf32>
    %132 = arith.addf %131, %130 : vector<1x128xf32>
    %133 = arith.divf %131, %132 : vector<1x128xf32>
    %134 = vector.extract_strided_slice %133 {offsets = [0, 0], sizes = [1, 32], strides = [1, 1]} : vector<1x128xf32> to vector<1x32xf32>
    %135 = vector.extract_strided_slice %133 {offsets = [0, 32], sizes = [1, 32], strides = [1, 1]} : vector<1x128xf32> to vector<1x32xf32>
    %136 = vector.extract_strided_slice %133 {offsets = [0, 64], sizes = [1, 32], strides = [1, 1]} : vector<1x128xf32> to vector<1x32xf32>
    %cst_42 = arith.constant 2.000000e+00 : f32
    %137 = vector.broadcast %cst_42 : f32 to vector<1x32xf32>
    %138 = arith.mulf %137, %136 : vector<1x32xf32>
    %cst_43 = arith.constant 1.000000e+00 : f32
    %139 = vector.broadcast %cst_43 : f32 to vector<1x32xf32>
    %140 = arith.subf %138, %139 : vector<1x32xf32>
    %141 = vector.extract_strided_slice %133 {offsets = [0, 96], sizes = [1, 32], strides = [1, 1]} : vector<1x128xf32> to vector<1x32xf32>
    %142 = arith.mulf %135, %100 : vector<1x32xf32>
    %143 = arith.mulf %134, %140 : vector<1x32xf32>
    %144 = arith.addf %142, %143 : vector<1x32xf32>
    %145 = math.tanh %144 : vector<1x32xf32>
    %146 = arith.mulf %141, %145 : vector<1x32xf32>
    %c2 = arith.constant 2 : index
    %c0_44 = arith.constant 0 : index
    %147 = vector.load %arg8[%c2, %c0_44] : memref<8x32xf32, #tpu.memory_space<vmem>>, vector<1x32xf32>
    tpu.vector_store %arg8[%c2, %c0_44], %146 {strides = array<i32>} : memref<8x32xf32, #tpu.memory_space<vmem>>, vector<1x32xf32>,
    %cst_45 = arith.constant dense<0.000000e+00> : vector<1x128xf32>
    %148 = tpu.matmul %146, %4, %cst_45 {dimension_numbers = #tpu.dot_dimension_numbers<[1], [0], [0], [1], [0, 0, 1, 1], [], []>} : vector<1x32xf32>, vector<32x128xf32>, vector<1x128xf32> -> vector<1x128xf32>
    %149 = vector.extract_strided_slice %14 {offsets = [3, 0], sizes = [1, 128], strides = [1, 1]} : vector<8x128xf32> to vector<1x128xf32>
    %cst_46 = arith.constant dense<0.000000e+00> : vector<1x128xf32>
    %150 = tpu.matmul %125, %1, %cst_46 {dimension_numbers = #tpu.dot_dimension_numbers<[1], [0], [0], [1], [0, 0, 1, 1], [], []>} : vector<1x32xf32>, vector<32x128xf32>, vector<1x128xf32> -> vector<1x128xf32>
    %151 = arith.addf %149, %150 : vector<1x128xf32>
    %152 = arith.negf %151 : vector<1x128xf32>
    %153 = math.exp %152 : vector<1x128xf32>
    %cst_47 = arith.constant 1.000000e+00 : f32
    %154 = vector.broadcast %cst_47 : f32 to vector<1x128xf32>
    %155 = arith.addf %154, %153 : vector<1x128xf32>
    %156 = arith.divf %154, %155 : vector<1x128xf32>
    %157 = vector.extract_strided_slice %156 {offsets = [0, 0], sizes = [1, 32], strides = [1, 1]} : vector<1x128xf32> to vector<1x32xf32>
    %158 = vector.extract_strided_slice %156 {offsets = [0, 32], sizes = [1, 32], strides = [1, 1]} : vector<1x128xf32> to vector<1x32xf32>
    %159 = vector.extract_strided_slice %156 {offsets = [0, 64], sizes = [1, 32], strides = [1, 1]} : vector<1x128xf32> to vector<1x32xf32>
    %cst_48 = arith.constant 2.000000e+00 : f32
    %160 = vector.broadcast %cst_48 : f32 to vector<1x32xf32>
    %161 = arith.mulf %160, %159 : vector<1x32xf32>
    %cst_49 = arith.constant 1.000000e+00 : f32
    %162 = vector.broadcast %cst_49 : f32 to vector<1x32xf32>
    %163 = arith.subf %161, %162 : vector<1x32xf32>
    %164 = vector.extract_strided_slice %156 {offsets = [0, 96], sizes = [1, 32], strides = [1, 1]} : vector<1x128xf32> to vector<1x32xf32>
    %165 = arith.mulf %158, %123 : vector<1x32xf32>
    %166 = arith.mulf %157, %163 : vector<1x32xf32>
    %167 = arith.addf %165, %166 : vector<1x32xf32>
    %168 = math.tanh %167 : vector<1x32xf32>
    %169 = arith.mulf %164, %168 : vector<1x32xf32>
    %cst_50 = arith.constant dense<0.000000e+00> : vector<1x128xf32>
    %170 = tpu.matmul %169, %3, %cst_50 {dimension_numbers = #tpu.dot_dimension_numbers<[1], [0], [0], [1], [0, 0, 1, 1], [], []>} : vector<1x32xf32>, vector<32x128xf32>, vector<1x128xf32> -> vector<1x128xf32>
    %171 = arith.addf %170, %148 : vector<1x128xf32>
    %172 = arith.addf %171, %5 : vector<1x128xf32>
    %173 = arith.negf %172 : vector<1x128xf32>
    %174 = math.exp %173 : vector<1x128xf32>
    %cst_51 = arith.constant 1.000000e+00 : f32
    %175 = vector.broadcast %cst_51 : f32 to vector<1x128xf32>
    %176 = arith.addf %175, %174 : vector<1x128xf32>
    %177 = arith.divf %175, %176 : vector<1x128xf32>
    %178 = vector.extract_strided_slice %177 {offsets = [0, 0], sizes = [1, 32], strides = [1, 1]} : vector<1x128xf32> to vector<1x32xf32>
    %179 = vector.extract_strided_slice %177 {offsets = [0, 32], sizes = [1, 32], strides = [1, 1]} : vector<1x128xf32> to vector<1x32xf32>
    %180 = vector.extract_strided_slice %177 {offsets = [0, 64], sizes = [1, 32], strides = [1, 1]} : vector<1x128xf32> to vector<1x32xf32>
    %cst_52 = arith.constant 2.000000e+00 : f32
    %181 = vector.broadcast %cst_52 : f32 to vector<1x32xf32>
    %182 = arith.mulf %181, %180 : vector<1x32xf32>
    %cst_53 = arith.constant 1.000000e+00 : f32
    %183 = vector.broadcast %cst_53 : f32 to vector<1x32xf32>
    %184 = arith.subf %182, %183 : vector<1x32xf32>
    %185 = vector.extract_strided_slice %177 {offsets = [0, 96], sizes = [1, 32], strides = [1, 1]} : vector<1x128xf32> to vector<1x32xf32>
    %186 = arith.mulf %179, %144 : vector<1x32xf32>
    %187 = arith.mulf %178, %184 : vector<1x32xf32>
    %188 = arith.addf %186, %187 : vector<1x32xf32>
    %189 = math.tanh %188 : vector<1x32xf32>
    %190 = arith.mulf %185, %189 : vector<1x32xf32>
    %c3 = arith.constant 3 : index
    %c0_54 = arith.constant 0 : index
    %191 = vector.load %arg8[%c3, %c0_54] : memref<8x32xf32, #tpu.memory_space<vmem>>, vector<1x32xf32>
    tpu.vector_store %arg8[%c3, %c0_54], %190 {strides = array<i32>} : memref<8x32xf32, #tpu.memory_space<vmem>>, vector<1x32xf32>,
    %cst_55 = arith.constant dense<0.000000e+00> : vector<1x128xf32>
    %192 = tpu.matmul %190, %4, %cst_55 {dimension_numbers = #tpu.dot_dimension_numbers<[1], [0], [0], [1], [0, 0, 1, 1], [], []>} : vector<1x32xf32>, vector<32x128xf32>, vector<1x128xf32> -> vector<1x128xf32>
    %193 = vector.extract_strided_slice %14 {offsets = [4, 0], sizes = [1, 128], strides = [1, 1]} : vector<8x128xf32> to vector<1x128xf32>
    %cst_56 = arith.constant dense<0.000000e+00> : vector<1x128xf32>
    %194 = tpu.matmul %169, %1, %cst_56 {dimension_numbers = #tpu.dot_dimension_numbers<[1], [0], [0], [1], [0, 0, 1, 1], [], []>} : vector<1x32xf32>, vector<32x128xf32>, vector<1x128xf32> -> vector<1x128xf32>
    %195 = arith.addf %193, %194 : vector<1x128xf32>
    %196 = arith.negf %195 : vector<1x128xf32>
    %197 = math.exp %196 : vector<1x128xf32>
    %cst_57 = arith.constant 1.000000e+00 : f32
    %198 = vector.broadcast %cst_57 : f32 to vector<1x128xf32>
    %199 = arith.addf %198, %197 : vector<1x128xf32>
    %200 = arith.divf %198, %199 : vector<1x128xf32>
    %201 = vector.extract_strided_slice %200 {offsets = [0, 0], sizes = [1, 32], strides = [1, 1]} : vector<1x128xf32> to vector<1x32xf32>
    %202 = vector.extract_strided_slice %200 {offsets = [0, 32], sizes = [1, 32], strides = [1, 1]} : vector<1x128xf32> to vector<1x32xf32>
    %203 = vector.extract_strided_slice %200 {offsets = [0, 64], sizes = [1, 32], strides = [1, 1]} : vector<1x128xf32> to vector<1x32xf32>
    %cst_58 = arith.constant 2.000000e+00 : f32
    %204 = vector.broadcast %cst_58 : f32 to vector<1x32xf32>
    %205 = arith.mulf %204, %203 : vector<1x32xf32>
    %cst_59 = arith.constant 1.000000e+00 : f32
    %206 = vector.broadcast %cst_59 : f32 to vector<1x32xf32>
    %207 = arith.subf %205, %206 : vector<1x32xf32>
    %208 = vector.extract_strided_slice %200 {offsets = [0, 96], sizes = [1, 32], strides = [1, 1]} : vector<1x128xf32> to vector<1x32xf32>
    %209 = arith.mulf %202, %167 : vector<1x32xf32>
    %210 = arith.mulf %201, %207 : vector<1x32xf32>
    %211 = arith.addf %209, %210 : vector<1x32xf32>
    %212 = math.tanh %211 : vector<1x32xf32>
    %213 = arith.mulf %208, %212 : vector<1x32xf32>
    %cst_60 = arith.constant dense<0.000000e+00> : vector<1x128xf32>
    %214 = tpu.matmul %213, %3, %cst_60 {dimension_numbers = #tpu.dot_dimension_numbers<[1], [0], [0], [1], [0, 0, 1, 1], [], []>} : vector<1x32xf32>, vector<32x128xf32>, vector<1x128xf32> -> vector<1x128xf32>
    %215 = arith.addf %214, %192 : vector<1x128xf32>
    %216 = arith.addf %215, %5 : vector<1x128xf32>
    %217 = arith.negf %216 : vector<1x128xf32>
    %218 = math.exp %217 : vector<1x128xf32>
    %cst_61 = arith.constant 1.000000e+00 : f32
    %219 = vector.broadcast %cst_61 : f32 to vector<1x128xf32>
    %220 = arith.addf %219, %218 : vector<1x128xf32>
    %221 = arith.divf %219, %220 : vector<1x128xf32>
    %222 = vector.extract_strided_slice %221 {offsets = [0, 0], sizes = [1, 32], strides = [1, 1]} : vector<1x128xf32> to vector<1x32xf32>
    %223 = vector.extract_strided_slice %221 {offsets = [0, 32], sizes = [1, 32], strides = [1, 1]} : vector<1x128xf32> to vector<1x32xf32>
    %224 = vector.extract_strided_slice %221 {offsets = [0, 64], sizes = [1, 32], strides = [1, 1]} : vector<1x128xf32> to vector<1x32xf32>
    %cst_62 = arith.constant 2.000000e+00 : f32
    %225 = vector.broadcast %cst_62 : f32 to vector<1x32xf32>
    %226 = arith.mulf %225, %224 : vector<1x32xf32>
    %cst_63 = arith.constant 1.000000e+00 : f32
    %227 = vector.broadcast %cst_63 : f32 to vector<1x32xf32>
    %228 = arith.subf %226, %227 : vector<1x32xf32>
    %229 = vector.extract_strided_slice %221 {offsets = [0, 96], sizes = [1, 32], strides = [1, 1]} : vector<1x128xf32> to vector<1x32xf32>
    %230 = arith.mulf %223, %188 : vector<1x32xf32>
    %231 = arith.mulf %222, %228 : vector<1x32xf32>
    %232 = arith.addf %230, %231 : vector<1x32xf32>
    %233 = math.tanh %232 : vector<1x32xf32>
    %234 = arith.mulf %229, %233 : vector<1x32xf32>
    %c4 = arith.constant 4 : index
    %c0_64 = arith.constant 0 : index
    %235 = vector.load %arg8[%c4, %c0_64] : memref<8x32xf32, #tpu.memory_space<vmem>>, vector<1x32xf32>
    tpu.vector_store %arg8[%c4, %c0_64], %234 {strides = array<i32>} : memref<8x32xf32, #tpu.memory_space<vmem>>, vector<1x32xf32>,
    %cst_65 = arith.constant dense<0.000000e+00> : vector<1x128xf32>
    %236 = tpu.matmul %234, %4, %cst_65 {dimension_numbers = #tpu.dot_dimension_numbers<[1], [0], [0], [1], [0, 0, 1, 1], [], []>} : vector<1x32xf32>, vector<32x128xf32>, vector<1x128xf32> -> vector<1x128xf32>
    %237 = vector.extract_strided_slice %14 {offsets = [5, 0], sizes = [1, 128], strides = [1, 1]} : vector<8x128xf32> to vector<1x128xf32>
    %cst_66 = arith.constant dense<0.000000e+00> : vector<1x128xf32>
    %238 = tpu.matmul %213, %1, %cst_66 {dimension_numbers = #tpu.dot_dimension_numbers<[1], [0], [0], [1], [0, 0, 1, 1], [], []>} : vector<1x32xf32>, vector<32x128xf32>, vector<1x128xf32> -> vector<1x128xf32>
    %239 = arith.addf %237, %238 : vector<1x128xf32>
    %240 = arith.negf %239 : vector<1x128xf32>
    %241 = math.exp %240 : vector<1x128xf32>
    %cst_67 = arith.constant 1.000000e+00 : f32
    %242 = vector.broadcast %cst_67 : f32 to vector<1x128xf32>
    %243 = arith.addf %242, %241 : vector<1x128xf32>
    %244 = arith.divf %242, %243 : vector<1x128xf32>
    %245 = vector.extract_strided_slice %244 {offsets = [0, 0], sizes = [1, 32], strides = [1, 1]} : vector<1x128xf32> to vector<1x32xf32>
    %246 = vector.extract_strided_slice %244 {offsets = [0, 32], sizes = [1, 32], strides = [1, 1]} : vector<1x128xf32> to vector<1x32xf32>
    %247 = vector.extract_strided_slice %244 {offsets = [0, 64], sizes = [1, 32], strides = [1, 1]} : vector<1x128xf32> to vector<1x32xf32>
    %cst_68 = arith.constant 2.000000e+00 : f32
    %248 = vector.broadcast %cst_68 : f32 to vector<1x32xf32>
    %249 = arith.mulf %248, %247 : vector<1x32xf32>
    %cst_69 = arith.constant 1.000000e+00 : f32
    %250 = vector.broadcast %cst_69 : f32 to vector<1x32xf32>
    %251 = arith.subf %249, %250 : vector<1x32xf32>
    %252 = vector.extract_strided_slice %244 {offsets = [0, 96], sizes = [1, 32], strides = [1, 1]} : vector<1x128xf32> to vector<1x32xf32>
    %253 = arith.mulf %246, %211 : vector<1x32xf32>
    %254 = arith.mulf %245, %251 : vector<1x32xf32>
    %255 = arith.addf %253, %254 : vector<1x32xf32>
    %256 = math.tanh %255 : vector<1x32xf32>
    %257 = arith.mulf %252, %256 : vector<1x32xf32>
    %cst_70 = arith.constant dense<0.000000e+00> : vector<1x128xf32>
    %258 = tpu.matmul %257, %3, %cst_70 {dimension_numbers = #tpu.dot_dimension_numbers<[1], [0], [0], [1], [0, 0, 1, 1], [], []>} : vector<1x32xf32>, vector<32x128xf32>, vector<1x128xf32> -> vector<1x128xf32>
    %259 = arith.addf %258, %236 : vector<1x128xf32>
    %260 = arith.addf %259, %5 : vector<1x128xf32>
    %261 = arith.negf %260 : vector<1x128xf32>
    %262 = math.exp %261 : vector<1x128xf32>
    %cst_71 = arith.constant 1.000000e+00 : f32
    %263 = vector.broadcast %cst_71 : f32 to vector<1x128xf32>
    %264 = arith.addf %263, %262 : vector<1x128xf32>
    %265 = arith.divf %263, %264 : vector<1x128xf32>
    %266 = vector.extract_strided_slice %265 {offsets = [0, 0], sizes = [1, 32], strides = [1, 1]} : vector<1x128xf32> to vector<1x32xf32>
    %267 = vector.extract_strided_slice %265 {offsets = [0, 32], sizes = [1, 32], strides = [1, 1]} : vector<1x128xf32> to vector<1x32xf32>
    %268 = vector.extract_strided_slice %265 {offsets = [0, 64], sizes = [1, 32], strides = [1, 1]} : vector<1x128xf32> to vector<1x32xf32>
    %cst_72 = arith.constant 2.000000e+00 : f32
    %269 = vector.broadcast %cst_72 : f32 to vector<1x32xf32>
    %270 = arith.mulf %269, %268 : vector<1x32xf32>
    %cst_73 = arith.constant 1.000000e+00 : f32
    %271 = vector.broadcast %cst_73 : f32 to vector<1x32xf32>
    %272 = arith.subf %270, %271 : vector<1x32xf32>
    %273 = vector.extract_strided_slice %265 {offsets = [0, 96], sizes = [1, 32], strides = [1, 1]} : vector<1x128xf32> to vector<1x32xf32>
    %274 = arith.mulf %267, %232 : vector<1x32xf32>
    %275 = arith.mulf %266, %272 : vector<1x32xf32>
    %276 = arith.addf %274, %275 : vector<1x32xf32>
    %277 = math.tanh %276 : vector<1x32xf32>
    %278 = arith.mulf %273, %277 : vector<1x32xf32>
    %c5 = arith.constant 5 : index
    %c0_74 = arith.constant 0 : index
    %279 = vector.load %arg8[%c5, %c0_74] : memref<8x32xf32, #tpu.memory_space<vmem>>, vector<1x32xf32>
    tpu.vector_store %arg8[%c5, %c0_74], %278 {strides = array<i32>} : memref<8x32xf32, #tpu.memory_space<vmem>>, vector<1x32xf32>,
    %cst_75 = arith.constant dense<0.000000e+00> : vector<1x128xf32>
    %280 = tpu.matmul %278, %4, %cst_75 {dimension_numbers = #tpu.dot_dimension_numbers<[1], [0], [0], [1], [0, 0, 1, 1], [], []>} : vector<1x32xf32>, vector<32x128xf32>, vector<1x128xf32> -> vector<1x128xf32>
    %281 = vector.extract_strided_slice %14 {offsets = [6, 0], sizes = [1, 128], strides = [1, 1]} : vector<8x128xf32> to vector<1x128xf32>
    %cst_76 = arith.constant dense<0.000000e+00> : vector<1x128xf32>
    %282 = tpu.matmul %257, %1, %cst_76 {dimension_numbers = #tpu.dot_dimension_numbers<[1], [0], [0], [1], [0, 0, 1, 1], [], []>} : vector<1x32xf32>, vector<32x128xf32>, vector<1x128xf32> -> vector<1x128xf32>
    %283 = arith.addf %281, %282 : vector<1x128xf32>
    %284 = arith.negf %283 : vector<1x128xf32>
    %285 = math.exp %284 : vector<1x128xf32>
    %cst_77 = arith.constant 1.000000e+00 : f32
    %286 = vector.broadcast %cst_77 : f32 to vector<1x128xf32>
    %287 = arith.addf %286, %285 : vector<1x128xf32>
    %288 = arith.divf %286, %287 : vector<1x128xf32>
    %289 = vector.extract_strided_slice %288 {offsets = [0, 0], sizes = [1, 32], strides = [1, 1]} : vector<1x128xf32> to vector<1x32xf32>
    %290 = vector.extract_strided_slice %288 {offsets = [0, 32], sizes = [1, 32], strides = [1, 1]} : vector<1x128xf32> to vector<1x32xf32>
    %291 = vector.extract_strided_slice %288 {offsets = [0, 64], sizes = [1, 32], strides = [1, 1]} : vector<1x128xf32> to vector<1x32xf32>
    %cst_78 = arith.constant 2.000000e+00 : f32
    %292 = vector.broadcast %cst_78 : f32 to vector<1x32xf32>
    %293 = arith.mulf %292, %291 : vector<1x32xf32>
    %cst_79 = arith.constant 1.000000e+00 : f32
    %294 = vector.broadcast %cst_79 : f32 to vector<1x32xf32>
    %295 = arith.subf %293, %294 : vector<1x32xf32>
    %296 = vector.extract_strided_slice %288 {offsets = [0, 96], sizes = [1, 32], strides = [1, 1]} : vector<1x128xf32> to vector<1x32xf32>
    %297 = arith.mulf %290, %255 : vector<1x32xf32>
    %298 = arith.mulf %289, %295 : vector<1x32xf32>
    %299 = arith.addf %297, %298 : vector<1x32xf32>
    %300 = math.tanh %299 : vector<1x32xf32>
    %301 = arith.mulf %296, %300 : vector<1x32xf32>
    %cst_80 = arith.constant dense<0.000000e+00> : vector<1x128xf32>
    %302 = tpu.matmul %301, %3, %cst_80 {dimension_numbers = #tpu.dot_dimension_numbers<[1], [0], [0], [1], [0, 0, 1, 1], [], []>} : vector<1x32xf32>, vector<32x128xf32>, vector<1x128xf32> -> vector<1x128xf32>
    %303 = arith.addf %302, %280 : vector<1x128xf32>
    %304 = arith.addf %303, %5 : vector<1x128xf32>
    %305 = arith.negf %304 : vector<1x128xf32>
    %306 = math.exp %305 : vector<1x128xf32>
    %cst_81 = arith.constant 1.000000e+00 : f32
    %307 = vector.broadcast %cst_81 : f32 to vector<1x128xf32>
    %308 = arith.addf %307, %306 : vector<1x128xf32>
    %309 = arith.divf %307, %308 : vector<1x128xf32>
    %310 = vector.extract_strided_slice %309 {offsets = [0, 0], sizes = [1, 32], strides = [1, 1]} : vector<1x128xf32> to vector<1x32xf32>
    %311 = vector.extract_strided_slice %309 {offsets = [0, 32], sizes = [1, 32], strides = [1, 1]} : vector<1x128xf32> to vector<1x32xf32>
    %312 = vector.extract_strided_slice %309 {offsets = [0, 64], sizes = [1, 32], strides = [1, 1]} : vector<1x128xf32> to vector<1x32xf32>
    %cst_82 = arith.constant 2.000000e+00 : f32
    %313 = vector.broadcast %cst_82 : f32 to vector<1x32xf32>
    %314 = arith.mulf %313, %312 : vector<1x32xf32>
    %cst_83 = arith.constant 1.000000e+00 : f32
    %315 = vector.broadcast %cst_83 : f32 to vector<1x32xf32>
    %316 = arith.subf %314, %315 : vector<1x32xf32>
    %317 = vector.extract_strided_slice %309 {offsets = [0, 96], sizes = [1, 32], strides = [1, 1]} : vector<1x128xf32> to vector<1x32xf32>
    %318 = arith.mulf %311, %276 : vector<1x32xf32>
    %319 = arith.mulf %310, %316 : vector<1x32xf32>
    %320 = arith.addf %318, %319 : vector<1x32xf32>
    %321 = math.tanh %320 : vector<1x32xf32>
    %322 = arith.mulf %317, %321 : vector<1x32xf32>
    %c6 = arith.constant 6 : index
    %c0_84 = arith.constant 0 : index
    %323 = vector.load %arg8[%c6, %c0_84] : memref<8x32xf32, #tpu.memory_space<vmem>>, vector<1x32xf32>
    tpu.vector_store %arg8[%c6, %c0_84], %322 {strides = array<i32>} : memref<8x32xf32, #tpu.memory_space<vmem>>, vector<1x32xf32>,
    %cst_85 = arith.constant dense<0.000000e+00> : vector<1x128xf32>
    %324 = tpu.matmul %322, %4, %cst_85 {dimension_numbers = #tpu.dot_dimension_numbers<[1], [0], [0], [1], [0, 0, 1, 1], [], []>} : vector<1x32xf32>, vector<32x128xf32>, vector<1x128xf32> -> vector<1x128xf32>
    %325 = vector.extract_strided_slice %14 {offsets = [7, 0], sizes = [1, 128], strides = [1, 1]} : vector<8x128xf32> to vector<1x128xf32>
    %cst_86 = arith.constant dense<0.000000e+00> : vector<1x128xf32>
    %326 = tpu.matmul %301, %1, %cst_86 {dimension_numbers = #tpu.dot_dimension_numbers<[1], [0], [0], [1], [0, 0, 1, 1], [], []>} : vector<1x32xf32>, vector<32x128xf32>, vector<1x128xf32> -> vector<1x128xf32>
    %327 = arith.addf %325, %326 : vector<1x128xf32>
    %328 = arith.negf %327 : vector<1x128xf32>
    %329 = math.exp %328 : vector<1x128xf32>
    %cst_87 = arith.constant 1.000000e+00 : f32
    %330 = vector.broadcast %cst_87 : f32 to vector<1x128xf32>
    %331 = arith.addf %330, %329 : vector<1x128xf32>
    %332 = arith.divf %330, %331 : vector<1x128xf32>
    %333 = vector.extract_strided_slice %332 {offsets = [0, 0], sizes = [1, 32], strides = [1, 1]} : vector<1x128xf32> to vector<1x32xf32>
    %334 = vector.extract_strided_slice %332 {offsets = [0, 32], sizes = [1, 32], strides = [1, 1]} : vector<1x128xf32> to vector<1x32xf32>
    %335 = vector.extract_strided_slice %332 {offsets = [0, 64], sizes = [1, 32], strides = [1, 1]} : vector<1x128xf32> to vector<1x32xf32>
    %cst_88 = arith.constant 2.000000e+00 : f32
    %336 = vector.broadcast %cst_88 : f32 to vector<1x32xf32>
    %337 = arith.mulf %336, %335 : vector<1x32xf32>
    %cst_89 = arith.constant 1.000000e+00 : f32
    %338 = vector.broadcast %cst_89 : f32 to vector<1x32xf32>
    %339 = arith.subf %337, %338 : vector<1x32xf32>
    %340 = vector.extract_strided_slice %332 {offsets = [0, 96], sizes = [1, 32], strides = [1, 1]} : vector<1x128xf32> to vector<1x32xf32>
    %341 = arith.mulf %334, %299 : vector<1x32xf32>
    %342 = arith.mulf %333, %339 : vector<1x32xf32>
    %343 = arith.addf %341, %342 : vector<1x32xf32>
    %344 = math.tanh %343 : vector<1x32xf32>
    %345 = arith.mulf %340, %344 : vector<1x32xf32>
    %cst_90 = arith.constant dense<0.000000e+00> : vector<1x128xf32>
    %346 = tpu.matmul %345, %3, %cst_90 {dimension_numbers = #tpu.dot_dimension_numbers<[1], [0], [0], [1], [0, 0, 1, 1], [], []>} : vector<1x32xf32>, vector<32x128xf32>, vector<1x128xf32> -> vector<1x128xf32>
    %347 = arith.addf %346, %324 : vector<1x128xf32>
    %348 = arith.addf %347, %5 : vector<1x128xf32>
    %349 = arith.negf %348 : vector<1x128xf32>
    %350 = math.exp %349 : vector<1x128xf32>
    %cst_91 = arith.constant 1.000000e+00 : f32
    %351 = vector.broadcast %cst_91 : f32 to vector<1x128xf32>
    %352 = arith.addf %351, %350 : vector<1x128xf32>
    %353 = arith.divf %351, %352 : vector<1x128xf32>
    %354 = vector.extract_strided_slice %353 {offsets = [0, 0], sizes = [1, 32], strides = [1, 1]} : vector<1x128xf32> to vector<1x32xf32>
    %355 = vector.extract_strided_slice %353 {offsets = [0, 32], sizes = [1, 32], strides = [1, 1]} : vector<1x128xf32> to vector<1x32xf32>
    %356 = vector.extract_strided_slice %353 {offsets = [0, 64], sizes = [1, 32], strides = [1, 1]} : vector<1x128xf32> to vector<1x32xf32>
    %cst_92 = arith.constant 2.000000e+00 : f32
    %357 = vector.broadcast %cst_92 : f32 to vector<1x32xf32>
    %358 = arith.mulf %357, %356 : vector<1x32xf32>
    %cst_93 = arith.constant 1.000000e+00 : f32
    %359 = vector.broadcast %cst_93 : f32 to vector<1x32xf32>
    %360 = arith.subf %358, %359 : vector<1x32xf32>
    %361 = vector.extract_strided_slice %353 {offsets = [0, 96], sizes = [1, 32], strides = [1, 1]} : vector<1x128xf32> to vector<1x32xf32>
    %362 = arith.mulf %355, %320 : vector<1x32xf32>
    %363 = arith.mulf %354, %360 : vector<1x32xf32>
    %364 = arith.addf %362, %363 : vector<1x32xf32>
    %365 = math.tanh %364 : vector<1x32xf32>
    %366 = arith.mulf %361, %365 : vector<1x32xf32>
    %c7 = arith.constant 7 : index
    %c0_94 = arith.constant 0 : index
    %367 = vector.load %arg8[%c7, %c0_94] : memref<8x32xf32, #tpu.memory_space<vmem>>, vector<1x32xf32>
    tpu.vector_store %arg8[%c7, %c0_94], %366 {strides = array<i32>} : memref<8x32xf32, #tpu.memory_space<vmem>>, vector<1x32xf32>,
    %c0_95 = arith.constant 0 : index
    %c0_96 = arith.constant 0 : index
    %368 = vector.load %arg8[%c0_95, %c0_96] : memref<8x32xf32, #tpu.memory_space<vmem>>, vector<8x32xf32>
    %cst_97 = arith.constant dense<0xFF800000> : vector<8xf32>
    %369 = vector.multi_reduction <maximumf>, %368, %cst_97 [1] : vector<8x32xf32> to vector<8xf32>
    %370 = vector.shape_cast %369 : vector<8xf32> to vector<8x1xf32>
    %371 = vector.broadcast %370 : vector<8x1xf32> to vector<8x32xf32>
    %372 = arith.subf %368, %371 : vector<8x32xf32>
    %373 = math.exp %372 : vector<8x32xf32>
    %374 = vector.broadcast %370 : vector<8x1xf32> to vector<8x32xf32>
    %375 = arith.subf %368, %374 : vector<8x32xf32>
    %cst_98 = arith.constant dense<0.000000e+00> : vector<8xf32>
    %376 = vector.multi_reduction <add>, %373, %cst_98 [1] : vector<8x32xf32> to vector<8xf32>
    %377 = vector.shape_cast %376 : vector<8xf32> to vector<8x1xf32>
    %378 = math.log %377 : vector<8x1xf32>
    %379 = vector.broadcast %378 : vector<8x1xf32> to vector<8x32xf32>
    %380 = arith.subf %375, %379 : vector<8x32xf32>
    %c0_99 = arith.constant 0 : index
    %c0_100 = arith.constant 0 : index
    %381 = vector.load %arg7[%c0_99, %c0_100] : memref<8x32xf32, #tpu.memory_space<vmem>>, vector<8x32xf32>
    tpu.vector_store %arg7[%c0_99, %c0_100], %380 {strides = array<i32>} : memref<8x32xf32, #tpu.memory_space<vmem>>, vector<8x32xf32>,
    return
  }
}

</mosaic_0001>

<llo_original>
// kernel: tpu_custom_call.1
$region0: #{tpu_custom_call.1}
  #allocation0 [shape = 'u32[]', space=smem, size = 0x4, offset = 0x4, fixed_abs, tag = 'smem constant byte address 0x4 - core index']
  #allocation1 [shape = 'u32[144,128]{1,0:T(1,128)}', space=vmem, size = 0x12000, scoped, tag = 'internal scratch']
  #allocation2 [shape = 'f32[8,32]{1,0:T(8,128)}', space=vmem, size = 0x1000, scoped, tag = 'scratch operand']
  %s0 = inlined_call_operand.vmem [shape: s32[8,1], index: 0, kind: input, shape index: {}]
  %s1 = inlined_call_operand.hbm [shape: f32[16,128], index: 1, kind: input, shape index: {}]
  %s2 = inlined_call_operand.hbm [shape: f32[32,128], index: 2, kind: input, shape index: {}]
  %s3 = inlined_call_operand.vmem [shape: f32[1,128], index: 3, kind: input, shape index: {}]
  %s4 = inlined_call_operand.hbm [shape: f32[32,128], index: 4, kind: input, shape index: {}]
  %s5 = inlined_call_operand.hbm [shape: f32[32,128], index: 5, kind: input, shape index: {}]
  %s6 = inlined_call_operand.vmem [shape: f32[1,128], index: 6, kind: input, shape index: {}]
  %s7 = inlined_call_operand.hbm [shape: f32[8,32], index: 7, kind: output, shape index: {}]
  %s8 = sld [smem:[#allocation0]]
  $region54: #{tpu_custom_call.1} parent=0
    _
  %s10 = ssub.s32 1, %s8
  %s11 = scalar_select 0, %s10, %s8
  $region1: #{tpu_custom_call.1} parent=0
    #allocation3 [shape = 'u8[8192]{0}', space=vmem, size = 0x2000, scoped, tag = 'input window, operand 1, single buffered']
    #allocation4 [shape = 's32[1]{0}', space=sflag, size = 0x4, scoped, tag = 'scoped memory for tpu_custom_call.1']
    #allocation5 [shape = 's32[1]{0}', space=sflag, size = 0x4, scoped, tag = 'scoped memory for tpu_custom_call.1']
    #allocation6 [shape = 'u8[16384]{0}', space=vmem, size = 0x4000, scoped, tag = 'input window, operand 2, single buffered']
    #allocation7 [shape = 's32[1]{0}', space=sflag, size = 0x4, scoped, tag = 'scoped memory for tpu_custom_call.1']
    #allocation8 [shape = 'u8[16384]{0}', space=vmem, size = 0x4000, scoped, tag = 'input window, operand 4, single buffered']
    #allocation9 [shape = 'u8[16384]{0}', space=vmem, size = 0x4000, scoped, tag = 'input window, operand 5, single buffered']
    #allocation10 [shape = 's32[1]{0}', space=sflag, size = 0x4, scoped, tag = 'scoped memory for tpu_custom_call.1']
    #allocation11 [shape = 'u8[4096]{0}', space=vmem, size = 0x1000, scoped, tag = 'output window, operand 0, single buffered']
    %12 = vsyncpa [#allocation4], 0
    %13 = vsyncpa [#allocation7], 0
    %14 = vsyncpa [#allocation10], 0
    %15 = vsyncpa [#allocation5], 0
    // Predicated region
    $region2: #{tpu_custom_call.1} parent=1 // pred_check
      _
    $region3: #{tpu_custom_call.1} parent=1 // pred_check_branch
      %17 = sbr.rel (0) target = $region5
    $region4: #{tpu_custom_call.1} parent=1 // pred_region
      _
    $region5: #{tpu_custom_call.1} parent=1 // pred_fallthru
      _
    // Predicated region
    $region6: #{tpu_custom_call.1} parent=1 // pred_check
      _
    $region7: #{tpu_custom_call.1} parent=1 // pred_check_branch
      %19 = sbr.rel (0) target = $region9
    $region8: #{tpu_custom_call.1} parent=1 // pred_region
      %s21 = ssub.s32 256, 256
      %22 = vsyncadd [#allocation4], %s21
      %s23 = sshll.u32 [#allocation3], 4
      %s24 = int_to_ptr.vmem [resolvable:$true] %s23
      %29 = dma.hbm_to_vmem [thread:$0]  %s1, 256, %s24, [#allocation4], 128, 128, 8
    $region9: #{tpu_custom_call.1} parent=1 // pred_fallthru
      _
    // Predicated region
    $region10: #{tpu_custom_call.1} parent=1 // pred_check
      _
    $region11: #{tpu_custom_call.1} parent=1 // pred_check_branch
      %31 = sbr.rel (0) target = $region13
    $region12: #{tpu_custom_call.1} parent=1 // pred_region
      %s33 = ssub.s32 512, 512
      %34 = vsyncadd [#allocation7], %s33
      %s35 = sshll.u32 [#allocation6], 4
      %s36 = int_to_ptr.vmem [resolvable:$true] %s35
      %41 = dma.hbm_to_vmem [thread:$0]  %s2, 512, %s36, [#allocation7], 128, 128, 8
    $region13: #{tpu_custom_call.1} parent=1 // pred_fallthru
      _
    // Predicated region
    $region14: #{tpu_custom_call.1} parent=1 // pred_check
      _
    $region15: #{tpu_custom_call.1} parent=1 // pred_check_branch
      %43 = sbr.rel (0) target = $region17
    $region16: #{tpu_custom_call.1} parent=1 // pred_region
      _
    $region17: #{tpu_custom_call.1} parent=1 // pred_fallthru
      _
    // Predicated region
    $region18: #{tpu_custom_call.1} parent=1 // pred_check
      _
    $region19: #{tpu_custom_call.1} parent=1 // pred_check_branch
      %45 = sbr.rel (0) target = $region21
    $region20: #{tpu_custom_call.1} parent=1 // pred_region
      %s47 = ssub.s32 512, 512
      %48 = vsyncadd [#allocation7], %s47
      %s49 = sshll.u32 [#allocation8], 4
      %s50 = int_to_ptr.vmem [resolvable:$true] %s49
      %55 = dma.hbm_to_vmem [thread:$0]  %s4, 512, %s50, [#allocation7], 128, 128, 8
    $region21: #{tpu_custom_call.1} parent=1 // pred_fallthru
      _
    // Predicated region
    $region22: #{tpu_custom_call.1} parent=1 // pred_check
      _
    $region23: #{tpu_custom_call.1} parent=1 // pred_check_branch
      %57 = sbr.rel (0) target = $region25
    $region24: #{tpu_custom_call.1} parent=1 // pred_region
      %s59 = ssub.s32 512, 512
      %60 = vsyncadd [#allocation10], %s59
      %s61 = sshll.u32 [#allocation9], 4
      %s62 = int_to_ptr.vmem [resolvable:$true] %s61
      %67 = dma.hbm_to_vmem [thread:$0]  %s5, 512, %s62, [#allocation10], 128, 128, 8
    $region25: #{tpu_custom_call.1} parent=1 // pred_fallthru
      _
    // Predicated region
    $region26: #{tpu_custom_call.1} parent=1 // pred_check
      _
    $region27: #{tpu_custom_call.1} parent=1 // pred_check_branch
      %69 = sbr.rel (0) target = $region29
    $region28: #{tpu_custom_call.1} parent=1 // pred_region
      _
    $region29: #{tpu_custom_call.1} parent=1 // pred_fallthru
      _
    // Predicated region
    $region30: #{tpu_custom_call.1} parent=1 // pred_check
      _
    $region31: #{tpu_custom_call.1} parent=1 // pred_check_branch
      %71 = sbr.rel (0) target = $region33
    $region32: #{tpu_custom_call.1} parent=1 // pred_region
      %72 = dma.done [#allocation4], 256
    $region33: #{tpu_custom_call.1} parent=1 // pred_fallthru
      _
    // Predicated region
    $region34: #{tpu_custom_call.1} parent=1 // pred_check
      _
    $region35: #{tpu_custom_call.1} parent=1 // pred_check_branch
      %74 = sbr.rel (0) target = $region37
    $region36: #{tpu_custom_call.1} parent=1 // pred_region
      %75 = dma.done [#allocation7], 512
    $region37: #{tpu_custom_call.1} parent=1 // pred_fallthru
      _
    // Predicated region
    $region38: #{tpu_custom_call.1} parent=1 // pred_check
      _
    $region39: #{tpu_custom_call.1} parent=1 // pred_check_branch
      %77 = sbr.rel (0) target = $region41
    $region40: #{tpu_custom_call.1} parent=1 // pred_region
      %78 = dma.done [#allocation7], 512
    $region41: #{tpu_custom_call.1} parent=1 // pred_fallthru
      _
    // Predicated region
    $region42: #{tpu_custom_call.1} parent=1 // pred_check
      _
    $region43: #{tpu_custom_call.1} parent=1 // pred_check_branch
      %80 = sbr.rel (0) target = $region45
    $region44: #{tpu_custom_call.1} parent=1 // pred_region
      %81 = dma.done [#allocation10], 512
    $region45: #{tpu_custom_call.1} parent=1 // pred_fallthru
      _
    %v82 = vld [vmem:[#allocation3] sm:$0xff]
    %v83 = vld [vmem:[#allocation3 + $0x8] sm:$0xff]
    %v84 = vld [vmem:[#allocation6] sm:$0xff]
    %v85 = vld [vmem:[#allocation6 + $0x8] sm:$0xff]
    %v86 = vld [vmem:[#allocation6 + $0x10] sm:$0xff]
    %v87 = vld [vmem:[#allocation6 + $0x18] sm:$0xff]
    %v88 = vld [vmem:[%s3] sm:$0x1]
    %v89 = vld [vmem:[#allocation8] sm:$0xff]
    %v90 = vld [vmem:[#allocation8 + $0x8] sm:$0xff]
    %v91 = vld [vmem:[#allocation8 + $0x10] sm:$0xff]
    %v92 = vld [vmem:[#allocation8 + $0x18] sm:$0xff]
    %v93 = vld [vmem:[#allocation9] sm:$0xff]
    %v94 = vld [vmem:[#allocation9 + $0x8] sm:$0xff]
    %v95 = vld [vmem:[#allocation9 + $0x10] sm:$0xff]
    %v96 = vld [vmem:[#allocation9 + $0x18] sm:$0xff]
    %v97 = vld [vmem:[%s6] sm:$0x1]
    %v98 = vld [vmem:[%s0] sm:$0xff]
    %v99 = vlaneseq
    %v100 = vand.u32 %v99, 127
    %101 = vset.pattern.permute.xlu0 0
    %102 = vperm.xlu0 %101, %v98
    %v103 = vpop.permute.xlu0 %102
    %vm104 = vcmp.eq.s32.totalorder %v100, %v103
    %v105 = vsel %vm104, 1, 0
    %v106 = vcvt.s32.f32 %v105
    %v108 = vlaneseq
    %v109 = vshrl.u32 %v108, 7
    %v110 = vsub.s32 0, %v109
    %v111 = vrot.slane %v88, %v110
    %vm113 = vcmask 130048
    %v115 = vsel %vm113, %v106, 0
    %117 = vmatprep.subr.mxu0 0.0
    %118 = vmatpush1.msra.mxu0 %v82
    %119 = vmatprep.subr.mxu0 0.0
    %120 = vmatpush1.msra.mxu0 %v83
    %121 = vmatprep.subr.mxu0 0.0
    %122 = vmatpush1.msra.mxu0 0.0
    %123 = vmatprep.subr.mxu0 0.0
    %124 = vmatpush1.msra.mxu0 0.0
    %125 = vmatprep.subr.mxu0 0.0
    %126 = vmatpush1.msra.mxu0 0.0
    %127 = vmatprep.subr.mxu0 0.0
    %128 = vmatpush1.msra.mxu0 0.0
    %129 = vmatprep.subr.mxu0 0.0
    %130 = vmatpush1.msra.mxu0 0.0
    %131 = vmatprep.subr.mxu0 0.0
    %132 = vmatpush1.msra.mxu0 0.0
    %133 = vmatprep.subr.mxu0 0.0
    %134 = vmatpush1.msra.mxu0 0.0
    %135 = vmatprep.subr.mxu0 0.0
    %136 = vmatpush1.msra.mxu0 0.0
    %137 = vmatprep.subr.mxu0 0.0
    %138 = vmatpush1.msra.mxu0 0.0
    %139 = vmatprep.subr.mxu0 0.0
    %140 = vmatpush1.msra.mxu0 0.0
    %141 = vmatprep.subr.mxu0 0.0
    %142 = vmatpush1.msra.mxu0 0.0
    %143 = vmatprep.subr.mxu0 0.0
    %144 = vmatpush1.msra.mxu0 0.0
    %145 = vmatprep.subr.mxu0 0.0
    %146 = vmatpush1.msra.mxu0 0.0
    %147 = vmatprep.subr.mxu0 0.0
    %148 = vmatpush1.msra.mxu0 0.0
    %149 = vmatprep.subr.mxu0 0.0
    %150 = vmatpush1.msra.mxu0 0.0
    %151 = vmatprep.subr.mxu0 0.0
    %152 = vmatpush1.msra.mxu0 0.0
    %153 = vmatprep.subr.mxu0 0.0
    %154 = vmatpush1.msra.mxu0 0.0
    %155 = vmatprep.subr.mxu0 0.0
    %156 = vmatpush1.msra.mxu0 0.0
    %157 = vmatprep.subr.mxu0 0.0
    %158 = vmatpush1.msra.mxu0 0.0
    %159 = vmatprep.subr.mxu0 0.0
    %160 = vmatpush1.msra.mxu0 0.0
    %161 = vmatprep.subr.mxu0 0.0
    %162 = vmatpush1.msra.mxu0 0.0
    %163 = vmatprep.subr.mxu0 0.0
    %164 = vmatpush1.msra.mxu0 0.0
    %165 = vmatprep.subr.mxu0 0.0
    %166 = vmatpush1.msra.mxu0 0.0
    %167 = vmatprep.subr.mxu0 0.0
    %168 = vmatpush1.msra.mxu0 0.0
    %169 = vmatprep.subr.mxu0 0.0
    %170 = vmatpush1.msra.mxu0 0.0
    %171 = vmatprep.subr.mxu0 0.0
    %172 = vmatpush1.msra.mxu0 0.0
    %173 = vmatprep.subr.mxu0 0.0
    %174 = vmatpush1.msra.mxu0 0.0
    %175 = vmatprep.subr.mxu0 0.0
    %176 = vmatpush1.msra.mxu0 0.0
    %177 = vmatprep.subr.mxu0 0.0
    %178 = vmatpush1.msra.mxu0 0.0
    %179 = vmatprep.subr.mxu0 0.0
    %180 = vmatpush1.msra.mxu0 0.0
    %181 = vmatprep.mubr.f32.mxu0 0.0
    %182 = vmatmul.mubr.f32.gmra.mrb[0].mxu0 %v115
    %v183 = vpop.f32.mrb[0].mxu0
    %v184 = vadd.f32 %v111, %v183
    %v185 = vpop.f32.mrb[0].mxu0
    %186 = vdwg.mxu0
    %vm187 = vcmask 261120
    %v189 = vsel %vm187, 0.0, 0
    %191 = vmatprep.subr.mxu0 0.0
    %192 = vmatpush1.msra.mxu0 %v84
    %193 = vmatprep.subr.mxu0 0.0
    %194 = vmatpush1.msra.mxu0 %v85
    %195 = vmatprep.subr.mxu0 0.0
    %196 = vmatpush1.msra.mxu0 %v86
    %197 = vmatprep.subr.mxu0 0.0
    %198 = vmatpush1.msra.mxu0 %v87
    %199 = vmatprep.subr.mxu0 0.0
    %200 = vmatpush1.msra.mxu0 0.0
    %201 = vmatprep.subr.mxu0 0.0
    %202 = vmatpush1.msra.mxu0 0.0
    %203 = vmatprep.subr.mxu0 0.0
    %204 = vmatpush1.msra.mxu0 0.0
    %205 = vmatprep.subr.mxu0 0.0
    %206 = vmatpush1.msra.mxu0 0.0
    %207 = vmatprep.subr.mxu0 0.0
    %208 = vmatpush1.msra.mxu0 0.0
    %209 = vmatprep.subr.mxu0 0.0
    %210 = vmatpush1.msra.mxu0 0.0
    %211 = vmatprep.subr.mxu0 0.0
    %212 = vmatpush1.msra.mxu0 0.0
    %213 = vmatprep.subr.mxu0 0.0
    %214 = vmatpush1.msra.mxu0 0.0
    %215 = vmatprep.subr.mxu0 0.0
    %216 = vmatpush1.msra.mxu0 0.0
    %217 = vmatprep.subr.mxu0 0.0
    %218 = vmatpush1.msra.mxu0 0.0
    %219 = vmatprep.subr.mxu0 0.0
    %220 = vmatpush1.msra.mxu0 0.0
    %221 = vmatprep.subr.mxu0 0.0
    %222 = vmatpush1.msra.mxu0 0.0
    %223 = vmatprep.subr.mxu0 0.0
    %224 = vmatpush1.msra.mxu0 0.0
    %225 = vmatprep.subr.mxu0 0.0
    %226 = vmatpush1.msra.mxu0 0.0
    %227 = vmatprep.subr.mxu0 0.0
    %228 = vmatpush1.msra.mxu0 0.0
    %229 = vmatprep.subr.mxu0 0.0
    %230 = vmatpush1.msra.mxu0 0.0
    %231 = vmatprep.subr.mxu0 0.0
    %232 = vmatpush1.msra.mxu0 0.0
    %233 = vmatprep.subr.mxu0 0.0
    %234 = vmatpush1.msra.mxu0 0.0
    %235 = vmatprep.subr.mxu0 0.0
    %236 = vmatpush1.msra.mxu0 0.0
    %237 = vmatprep.subr.mxu0 0.0
    %238 = vmatpush1.msra.mxu0 0.0
    %239 = vmatprep.subr.mxu0 0.0
    %240 = vmatpush1.msra.mxu0 0.0
    %241 = vmatprep.subr.mxu0 0.0
    %242 = vmatpush1.msra.mxu0 0.0
    %243 = vmatprep.subr.mxu0 0.0
    %244 = vmatpush1.msra.mxu0 0.0
    %245 = vmatprep.subr.mxu0 0.0
    %246 = vmatpush1.msra.mxu0 0.0
    %247 = vmatprep.subr.mxu0 0.0
    %248 = vmatpush1.msra.mxu0 0.0
    %249 = vmatprep.subr.mxu0 0.0
    %250 = vmatpush1.msra.mxu0 0.0
    %251 = vmatprep.subr.mxu0 0.0
    %252 = vmatpush1.msra.mxu0 0.0
    %253 = vmatprep.subr.mxu0 0.0
    %254 = vmatpush1.msra.mxu0 0.0
    %255 = vmatprep.mubr.f32.mxu0 0.0
    %256 = vmatmul.mubr.f32.gmra.mrb[0].mxu0 %v189
    %v257 = vpop.f32.mrb[0].mxu0
    %v258 = vadd.f32 0.0, %v257
    %v259 = vpop.f32.mrb[0].mxu0
    %260 = vdwg.mxu0
    %v261 = vadd.f32 %v184, %v258
    %v262 = vxor.u32 %v261, 2147483648
    %v263 = vmul.f32 %v262, 1.442695
    %v264 = vpow.pop %v263
    %v265 = vadd.f32 %v264, 1.0
    %v266 = vrcp.pop %v265
    %v267 = vmul.f32 1.0, %v266
    %v268 = vmul.f32 %v267, 2.0
    %v269 = vsub.f32 %v268, 1.0
    %v270 = vmul.f32 %v267, 0.0
    %272 = vrot.lane.b32.xlu0 %v269, 64
    %v273 = vpop.permute.xlu0 %272
    %v275 = vmul.f32 %v267, %v273
    %277 = vrot.lane.b32.xlu0 %v275, 32
    %v278 = vpop.permute.xlu0 %277
    %v280 = vadd.f32 %v270, %v278
    %v281 = vtanh.pop %v280
    %283 = vrot.lane.b32.xlu0 %v281, 64
    %v284 = vpop.permute.xlu0 %283
    %v286 = vmul.f32 %v267, %v284
    %288 = vrot.lane.b32.xlu0 %v286, 32
    %v289 = vpop.permute.xlu0 %288
    %v290 = vsel %vm187, %v289, 0
    %292 = vmatprep.subr.mxu0 0.0
    %293 = vmatpush1.msra.mxu0 %v89
    %294 = vmatprep.subr.mxu0 0.0
    %295 = vmatpush1.msra.mxu0 %v90
    %296 = vmatprep.subr.mxu0 0.0
    %297 = vmatpush1.msra.mxu0 %v91
    %298 = vmatprep.subr.mxu0 0.0
    %299 = vmatpush1.msra.mxu0 %v92
    %300 = vmatprep.subr.mxu0 0.0
    %301 = vmatpush1.msra.mxu0 0.0
    %302 = vmatprep.subr.mxu0 0.0
    %303 = vmatpush1.msra.mxu0 0.0
    %304 = vmatprep.subr.mxu0 0.0
    %305 = vmatpush1.msra.mxu0 0.0
    %306 = vmatprep.subr.mxu0 0.0
    %307 = vmatpush1.msra.mxu0 0.0
    %308 = vmatprep.subr.mxu0 0.0
    %309 = vmatpush1.msra.mxu0 0.0
    %310 = vmatprep.subr.mxu0 0.0
    %311 = vmatpush1.msra.mxu0 0.0
    %312 = vmatprep.subr.mxu0 0.0
    %313 = vmatpush1.msra.mxu0 0.0
    %314 = vmatprep.subr.mxu0 0.0
    %315 = vmatpush1.msra.mxu0 0.0
    %316 = vmatprep.subr.mxu0 0.0
    %317 = vmatpush1.msra.mxu0 0.0
    %318 = vmatprep.subr.mxu0 0.0
    %319 = vmatpush1.msra.mxu0 0.0
    %320 = vmatprep.subr.mxu0 0.0
    %321 = vmatpush1.msra.mxu0 0.0
    %322 = vmatprep.subr.mxu0 0.0
    %323 = vmatpush1.msra.mxu0 0.0
    %324 = vmatprep.subr.mxu0 0.0
    %325 = vmatpush1.msra.mxu0 0.0
    %326 = vmatprep.subr.mxu0 0.0
    %327 = vmatpush1.msra.mxu0 0.0
    %328 = vmatprep.subr.mxu0 0.0
    %329 = vmatpush1.msra.mxu0 0.0
    %330 = vmatprep.subr.mxu0 0.0
    %331 = vmatpush1.msra.mxu0 0.0
    %332 = vmatprep.subr.mxu0 0.0
    %333 = vmatpush1.msra.mxu0 0.0
    %334 = vmatprep.subr.mxu0 0.0
    %335 = vmatpush1.msra.mxu0 0.0
    %336 = vmatprep.subr.mxu0 0.0
    %337 = vmatpush1.msra.mxu0 0.0
    %338 = vmatprep.subr.mxu0 0.0
    %339 = vmatpush1.msra.mxu0 0.0
    %340 = vmatprep.subr.mxu0 0.0
    %341 = vmatpush1.msra.mxu0 0.0
    %342 = vmatprep.subr.mxu0 0.0
    %343 = vmatpush1.msra.mxu0 0.0
    %344 = vmatprep.subr.mxu0 0.0
    %345 = vmatpush1.msra.mxu0 0.0
    %346 = vmatprep.subr.mxu0 0.0
    %347 = vmatpush1.msra.mxu0 0.0
    %348 = vmatprep.subr.mxu0 0.0
    %349 = vmatpush1.msra.mxu0 0.0
    %350 = vmatprep.subr.mxu0 0.0
    %351 = vmatpush1.msra.mxu0 0.0
    %352 = vmatprep.subr.mxu0 0.0
    %353 = vmatpush1.msra.mxu0 0.0
    %354 = vmatprep.subr.mxu0 0.0
    %355 = vmatpush1.msra.mxu0 0.0
    %356 = vmatprep.mubr.f32.mxu0 0.0
    %357 = vmatmul.mubr.f32.gmra.mrb[0].mxu0 %v290
    %v358 = vpop.f32.mrb[0].mxu0
    %v359 = vadd.f32 %v97, %v358
    %v360 = vpop.f32.mrb[0].mxu0
    %361 = vdwg.mxu0
    %v362 = vxor.u32 %v359, 2147483648
    %v363 = vmul.f32 %v362, 1.442695
    %v364 = vpow.pop %v363
    %v365 = vadd.f32 %v364, 1.0
    %v366 = vrcp.pop %v365
    %v367 = vmul.f32 1.0, %v366
    %v368 = vmul.f32 %v367, 2.0
    %v369 = vsub.f32 %v368, 1.0
    %v370 = vmul.f32 %v367, 0.0
    %372 = vrot.lane.b32.xlu0 %v369, 64
    %v373 = vpop.permute.xlu0 %372
    %v375 = vmul.f32 %v367, %v373
    %377 = vrot.lane.b32.xlu0 %v375, 32
    %v378 = vpop.permute.xlu0 %377
    %v380 = vadd.f32 %v370, %v378
    %v381 = vtanh.pop %v380
    %383 = vrot.lane.b32.xlu0 %v381, 64
    %v384 = vpop.permute.xlu0 %383
    %v386 = vmul.f32 %v367, %v384
    %388 = vrot.lane.b32.xlu0 %v386, 32
    %v389 = vpop.permute.xlu0 %388
    %vm391 = vcmask 253952
    %392 = vst.msk [vmem:[#allocation2] sm:$0x1] %vm391, %v389
    %v393 = vsel %vm187, %v389, 0
    %395 = vmatprep.subr.mxu0 0.0
    %396 = vmatpush1.msra.mxu0 %v93
    %397 = vmatprep.subr.mxu0 0.0
    %398 = vmatpush1.msra.mxu0 %v94
    %399 = vmatprep.subr.mxu0 0.0
    %400 = vmatpush1.msra.mxu0 %v95
    %401 = vmatprep.subr.mxu0 0.0
    %402 = vmatpush1.msra.mxu0 %v96
    %403 = vmatprep.subr.mxu0 0.0
    %404 = vmatpush1.msra.mxu0 0.0
    %405 = vmatprep.subr.mxu0 0.0
    %406 = vmatpush1.msra.mxu0 0.0
    %407 = vmatprep.subr.mxu0 0.0
    %408 = vmatpush1.msra.mxu0 0.0
    %409 = vmatprep.subr.mxu0 0.0
    %410 = vmatpush1.msra.mxu0 0.0
    %411 = vmatprep.subr.mxu0 0.0
    %412 = vmatpush1.msra.mxu0 0.0
    %413 = vmatprep.subr.mxu0 0.0
    %414 = vmatpush1.msra.mxu0 0.0
    %415 = vmatprep.subr.mxu0 0.0
    %416 = vmatpush1.msra.mxu0 0.0
    %417 = vmatprep.subr.mxu0 0.0
    %418 = vmatpush1.msra.mxu0 0.0
    %419 = vmatprep.subr.mxu0 0.0
    %420 = vmatpush1.msra.mxu0 0.0
    %421 = vmatprep.subr.mxu0 0.0
    %422 = vmatpush1.msra.mxu0 0.0
    %423 = vmatprep.subr.mxu0 0.0
    %424 = vmatpush1.msra.mxu0 0.0
    %425 = vmatprep.subr.mxu0 0.0
    %426 = vmatpush1.msra.mxu0 0.0
    %427 = vmatprep.subr.mxu0 0.0
    %428 = vmatpush1.msra.mxu0 0.0
    %429 = vmatprep.subr.mxu0 0.0
    %430 = vmatpush1.msra.mxu0 0.0
    %431 = vmatprep.subr.mxu0 0.0
    %432 = vmatpush1.msra.mxu0 0.0
    %433 = vmatprep.subr.mxu0 0.0
    %434 = vmatpush1.msra.mxu0 0.0
    %435 = vmatprep.subr.mxu0 0.0
    %436 = vmatpush1.msra.mxu0 0.0
    %437 = vmatprep.subr.mxu0 0.0
    %438 = vmatpush1.msra.mxu0 0.0
    %439 = vmatprep.subr.mxu0 0.0
    %440 = vmatpush1.msra.mxu0 0.0
    %441 = vmatprep.subr.mxu0 0.0
    %442 = vmatpush1.msra.mxu0 0.0
    %443 = vmatprep.subr.mxu0 0.0
    %444 = vmatpush1.msra.mxu0 0.0
    %445 = vmatprep.subr.mxu0 0.0
    %446 = vmatpush1.msra.mxu0 0.0
    %447 = vmatprep.subr.mxu0 0.0
    %448 = vmatpush1.msra.mxu0 0.0
    %449 = vmatprep.subr.mxu0 0.0
    %450 = vmatpush1.msra.mxu0 0.0
    %451 = vmatprep.subr.mxu0 0.0
    %452 = vmatpush1.msra.mxu0 0.0
    %453 = vmatprep.subr.mxu0 0.0
    %454 = vmatpush1.msra.mxu0 0.0
    %455 = vmatprep.subr.mxu0 0.0
    %456 = vmatpush1.msra.mxu0 0.0
    %457 = vmatprep.subr.mxu0 0.0
    %458 = vmatpush1.msra.mxu0 0.0
    %459 = vmatprep.mubr.f32.mxu0 0.0
    %460 = vmatmul.mubr.f32.gmra.mrb[0].mxu0 %v393
    %v461 = vpop.f32.mrb[0].mxu0
    %v462 = vadd.f32 0.0, %v461
    %v463 = vpop.f32.mrb[0].mxu0
    %464 = vdwg.mxu0
    %465 = vmatprep.subr.mxu0 0.0
    %466 = vmatpush1.msra.mxu0 %v84
    %467 = vmatprep.subr.mxu0 0.0
    %468 = vmatpush1.msra.mxu0 %v85
    %469 = vmatprep.subr.mxu0 0.0
    %470 = vmatpush1.msra.mxu0 %v86
    %471 = vmatprep.subr.mxu0 0.0
    %472 = vmatpush1.msra.mxu0 %v87
    %473 = vmatprep.subr.mxu0 0.0
    %474 = vmatpush1.msra.mxu0 0.0
    %475 = vmatprep.subr.mxu0 0.0
    %476 = vmatpush1.msra.mxu0 0.0
    %477 = vmatprep.subr.mxu0 0.0
    %478 = vmatpush1.msra.mxu0 0.0
    %479 = vmatprep.subr.mxu0 0.0
    %480 = vmatpush1.msra.mxu0 0.0
    %481 = vmatprep.subr.mxu0 0.0
    %482 = vmatpush1.msra.mxu0 0.0
    %483 = vmatprep.subr.mxu0 0.0
    %484 = vmatpush1.msra.mxu0 0.0
    %485 = vmatprep.subr.mxu0 0.0
    %486 = vmatpush1.msra.mxu0 0.0
    %487 = vmatprep.subr.mxu0 0.0
    %488 = vmatpush1.msra.mxu0 0.0
    %489 = vmatprep.subr.mxu0 0.0
    %490 = vmatpush1.msra.mxu0 0.0
    %491 = vmatprep.subr.mxu0 0.0
    %492 = vmatpush1.msra.mxu0 0.0
    %493 = vmatprep.subr.mxu0 0.0
    %494 = vmatpush1.msra.mxu0 0.0
    %495 = vmatprep.subr.mxu0 0.0
    %496 = vmatpush1.msra.mxu0 0.0
    %497 = vmatprep.subr.mxu0 0.0
    %498 = vmatpush1.msra.mxu0 0.0
    %499 = vmatprep.subr.mxu0 0.0
    %500 = vmatpush1.msra.mxu0 0.0
    %501 = vmatprep.subr.mxu0 0.0
    %502 = vmatpush1.msra.mxu0 0.0
    %503 = vmatprep.subr.mxu0 0.0
    %504 = vmatpush1.msra.mxu0 0.0
    %505 = vmatprep.subr.mxu0 0.0
    %506 = vmatpush1.msra.mxu0 0.0
    %507 = vmatprep.subr.mxu0 0.0
    %508 = vmatpush1.msra.mxu0 0.0
    %509 = vmatprep.subr.mxu0 0.0
    %510 = vmatpush1.msra.mxu0 0.0
    %511 = vmatprep.subr.mxu0 0.0
    %512 = vmatpush1.msra.mxu0 0.0
    %513 = vmatprep.subr.mxu0 0.0
    %514 = vmatpush1.msra.mxu0 0.0
    %515 = vmatprep.subr.mxu0 0.0
    %516 = vmatpush1.msra.mxu0 0.0
    %517 = vmatprep.subr.mxu0 0.0
    %518 = vmatpush1.msra.mxu0 0.0
    %519 = vmatprep.subr.mxu0 0.0
    %520 = vmatpush1.msra.mxu0 0.0
    %521 = vmatprep.subr.mxu0 0.0
    %522 = vmatpush1.msra.mxu0 0.0
    %523 = vmatprep.subr.mxu0 0.0
    %524 = vmatpush1.msra.mxu0 0.0
    %525 = vmatprep.subr.mxu0 0.0
    %526 = vmatpush1.msra.mxu0 0.0
    %527 = vmatprep.subr.mxu0 0.0
    %528 = vmatpush1.msra.mxu0 0.0
    %529 = vmatprep.mubr.f32.mxu0 0.0
    %530 = vmatmul.mubr.f32.gmra.mrb[0].mxu0 %v290
    %v531 = vpop.f32.mrb[0].mxu0
    %v532 = vadd.f32 0.0, %v531
    %v533 = vpop.f32.mrb[0].mxu0
    %534 = vdwg.mxu0
    %v536 = vrot.slane %v532, 7
    %v538 = vadd.f32 %v184, %v536
    %v539 = vxor.u32 %v538, 2147483648
    %v540 = vmul.f32 %v539, 1.442695
    %v541 = vpow.pop %v540
    %v542 = vadd.f32 %v541, 1.0
    %v543 = vrcp.pop %v542
    %v544 = vmul.f32 1.0, %v543
    %v545 = vmul.f32 %v544, 2.0
    %v546 = vsub.f32 %v545, 1.0
    %v548 = vrot.slane %v280, 7
    %v550 = vmul.f32 %v544, %v548
    %552 = vrot.lane.b32.xlu0 %v546, 64
    %v553 = vpop.permute.xlu0 %552
    %v555 = vmul.f32 %v544, %v553
    %557 = vrot.lane.b32.xlu0 %v555, 32
    %v558 = vpop.permute.xlu0 %557
    %v560 = vadd.f32 %v550, %v558
    %v561 = vtanh.pop %v560
    %563 = vrot.lane.b32.xlu0 %v561, 64
    %v564 = vpop.permute.xlu0 %563
    %v566 = vmul.f32 %v544, %v564
    %v568 = vrot.slane %v566, 1
    %569 = vrot.lane.b32.xlu0 %v568, 32
    %v570 = vpop.permute.xlu0 %569
    %v571 = vsel %vm187, %v570, 0
    %573 = vmatprep.subr.mxu0 0.0
    %574 = vmatpush1.msra.mxu0 %v89
    %575 = vmatprep.subr.mxu0 0.0
    %576 = vmatpush1.msra.mxu0 %v90
    %577 = vmatprep.subr.mxu0 0.0
    %578 = vmatpush1.msra.mxu0 %v91
    %579 = vmatprep.subr.mxu0 0.0
    %580 = vmatpush1.msra.mxu0 %v92
    %581 = vmatprep.subr.mxu0 0.0
    %582 = vmatpush1.msra.mxu0 0.0
    %583 = vmatprep.subr.mxu0 0.0
    %584 = vmatpush1.msra.mxu0 0.0
    %585 = vmatprep.subr.mxu0 0.0
    %586 = vmatpush1.msra.mxu0 0.0
    %587 = vmatprep.subr.mxu0 0.0
    %588 = vmatpush1.msra.mxu0 0.0
    %589 = vmatprep.subr.mxu0 0.0
    %590 = vmatpush1.msra.mxu0 0.0
    %591 = vmatprep.subr.mxu0 0.0
    %592 = vmatpush1.msra.mxu0 0.0
    %593 = vmatprep.subr.mxu0 0.0
    %594 = vmatpush1.msra.mxu0 0.0
    %595 = vmatprep.subr.mxu0 0.0
    %596 = vmatpush1.msra.mxu0 0.0
    %597 = vmatprep.subr.mxu0 0.0
    %598 = vmatpush1.msra.mxu0 0.0
    %599 = vmatprep.subr.mxu0 0.0
    %600 = vmatpush1.msra.mxu0 0.0
    %601 = vmatprep.subr.mxu0 0.0
    %602 = vmatpush1.msra.mxu0 0.0
    %603 = vmatprep.subr.mxu0 0.0
    %604 = vmatpush1.msra.mxu0 0.0
    %605 = vmatprep.subr.mxu0 0.0
    %606 = vmatpush1.msra.mxu0 0.0
    %607 = vmatprep.subr.mxu0 0.0
    %608 = vmatpush1.msra.mxu0 0.0
    %609 = vmatprep.subr.mxu0 0.0
    %610 = vmatpush1.msra.mxu0 0.0
    %611 = vmatprep.subr.mxu0 0.0
    %612 = vmatpush1.msra.mxu0 0.0
    %613 = vmatprep.subr.mxu0 0.0
    %614 = vmatpush1.msra.mxu0 0.0
    %615 = vmatprep.subr.mxu0 0.0
    %616 = vmatpush1.msra.mxu0 0.0
    %617 = vmatprep.subr.mxu0 0.0
    %618 = vmatpush1.msra.mxu0 0.0
    %619 = vmatprep.subr.mxu0 0.0
    %620 = vmatpush1.msra.mxu0 0.0
    %621 = vmatprep.subr.mxu0 0.0
    %622 = vmatpush1.msra.mxu0 0.0
    %623 = vmatprep.subr.mxu0 0.0
    %624 = vmatpush1.msra.mxu0 0.0
    %625 = vmatprep.subr.mxu0 0.0
    %626 = vmatpush1.msra.mxu0 0.0
    %627 = vmatprep.subr.mxu0 0.0
    %628 = vmatpush1.msra.mxu0 0.0
    %629 = vmatprep.subr.mxu0 0.0
    %630 = vmatpush1.msra.mxu0 0.0
    %631 = vmatprep.subr.mxu0 0.0
    %632 = vmatpush1.msra.mxu0 0.0
    %633 = vmatprep.subr.mxu0 0.0
    %634 = vmatpush1.msra.mxu0 0.0
    %635 = vmatprep.subr.mxu0 0.0
    %636 = vmatpush1.msra.mxu0 0.0
    %637 = vmatprep.mubr.f32.mxu0 0.0
    %638 = vmatmul.mubr.f32.gmra.mrb[0].mxu0 %v571
    %v639 = vpop.f32.mrb[0].mxu0
    %v640 = vadd.f32 %v462, %v639
    %v641 = vpop.f32.mrb[0].mxu0
    %642 = vdwg.mxu0
    %v643 = vadd.f32 %v640, %v97
    %v644 = vxor.u32 %v643, 2147483648
    %v645 = vmul.f32 %v644, 1.442695
    %v646 = vpow.pop %v645
    %v647 = vadd.f32 %v646, 1.0
    %v648 = vrcp.pop %v647
    %v649 = vmul.f32 1.0, %v648
    %v650 = vmul.f32 %v649, 2.0
    %v651 = vsub.f32 %v650, 1.0
    %v652 = vmul.f32 %v649, %v380
    %654 = vrot.lane.b32.xlu0 %v651, 64
    %v655 = vpop.permute.xlu0 %654
    %v657 = vmul.f32 %v649, %v655
    %659 = vrot.lane.b32.xlu0 %v657, 32
    %v660 = vpop.permute.xlu0 %659
    %v662 = vadd.f32 %v652, %v660
    %v663 = vtanh.pop %v662
    %665 = vrot.lane.b32.xlu0 %v663, 64
    %v666 = vpop.permute.xlu0 %665
    %v668 = vmul.f32 %v649, %v666
    %670 = vrot.lane.b32.xlu0 %v668, 32
    %v671 = vpop.permute.xlu0 %670
    %673 = vst.msk [vmem:[#allocation2 + $0x1] sm:$0x1] %vm391, %v671
    %v674 = vsel %vm187, %v671, 0
    %676 = vmatprep.subr.mxu0 0.0
    %677 = vmatpush1.msra.mxu0 %v93
    %678 = vmatprep.subr.mxu0 0.0
    %679 = vmatpush1.msra.mxu0 %v94
    %680 = vmatprep.subr.mxu0 0.0
    %681 = vmatpush1.msra.mxu0 %v95
    %682 = vmatprep.subr.mxu0 0.0
    %683 = vmatpush1.msra.mxu0 %v96
    %684 = vmatprep.subr.mxu0 0.0
    %685 = vmatpush1.msra.mxu0 0.0
    %686 = vmatprep.subr.mxu0 0.0
    %687 = vmatpush1.msra.mxu0 0.0
    %688 = vmatprep.subr.mxu0 0.0
    %689 = vmatpush1.msra.mxu0 0.0
    %690 = vmatprep.subr.mxu0 0.0
    %691 = vmatpush1.msra.mxu0 0.0
    %692 = vmatprep.subr.mxu0 0.0
    %693 = vmatpush1.msra.mxu0 0.0
    %694 = vmatprep.subr.mxu0 0.0
    %695 = vmatpush1.msra.mxu0 0.0
    %696 = vmatprep.subr.mxu0 0.0
    %697 = vmatpush1.msra.mxu0 0.0
    %698 = vmatprep.subr.mxu0 0.0
    %699 = vmatpush1.msra.mxu0 0.0
    %700 = vmatprep.subr.mxu0 0.0
    %701 = vmatpush1.msra.mxu0 0.0
    %702 = vmatprep.subr.mxu0 0.0
    %703 = vmatpush1.msra.mxu0 0.0
    %704 = vmatprep.subr.mxu0 0.0
    %705 = vmatpush1.msra.mxu0 0.0
    %706 = vmatprep.subr.mxu0 0.0
    %707 = vmatpush1.msra.mxu0 0.0
    %708 = vmatprep.subr.mxu0 0.0
    %709 = vmatpush1.msra.mxu0 0.0
    %710 = vmatprep.subr.mxu0 0.0
    %711 = vmatpush1.msra.mxu0 0.0
    %712 = vmatprep.subr.mxu0 0.0
    %713 = vmatpush1.msra.mxu0 0.0
    %714 = vmatprep.subr.mxu0 0.0
    %715 = vmatpush1.msra.mxu0 0.0
    %716 = vmatprep.subr.mxu0 0.0
    %717 = vmatpush1.msra.mxu0 0.0
    %718 = vmatprep.subr.mxu0 0.0
    %719 = vmatpush1.msra.mxu0 0.0
    %720 = vmatprep.subr.mxu0 0.0
    %721 = vmatpush1.msra.mxu0 0.0
    %722 = vmatprep.subr.mxu0 0.0
    %723 = vmatpush1.msra.mxu0 0.0
    %724 = vmatprep.subr.mxu0 0.0
    %725 = vmatpush1.msra.mxu0 0.0
    %726 = vmatprep.subr.mxu0 0.0
    %727 = vmatpush1.msra.mxu0 0.0
    %728 = vmatprep.subr.mxu0 0.0
    %729 = vmatpush1.msra.mxu0 0.0
    %730 = vmatprep.subr.mxu0 0.0
    %731 = vmatpush1.msra.mxu0 0.0
    %732 = vmatprep.subr.mxu0 0.0
    %733 = vmatpush1.msra.mxu0 0.0
    %734 = vmatprep.subr.mxu0 0.0
    %735 = vmatpush1.msra.mxu0 0.0
    %736 = vmatprep.subr.mxu0 0.0
    %737 = vmatpush1.msra.mxu0 0.0
    %738 = vmatprep.subr.mxu0 0.0
    %739 = vmatpush1.msra.mxu0 0.0
    %740 = vmatprep.mubr.f32.mxu0 0.0
    %741 = vmatmul.mubr.f32.gmra.mrb[0].mxu0 %v674
    %v742 = vpop.f32.mrb[0].mxu0
    %v743 = vadd.f32 0.0, %v742
    %v744 = vpop.f32.mrb[0].mxu0
    %745 = vdwg.mxu0
    %746 = vmatprep.subr.mxu0 0.0
    %747 = vmatpush1.msra.mxu0 %v84
    %748 = vmatprep.subr.mxu0 0.0
    %749 = vmatpush1.msra.mxu0 %v85
    %750 = vmatprep.subr.mxu0 0.0
    %751 = vmatpush1.msra.mxu0 %v86
    %752 = vmatprep.subr.mxu0 0.0
    %753 = vmatpush1.msra.mxu0 %v87
    %754 = vmatprep.subr.mxu0 0.0
    %755 = vmatpush1.msra.mxu0 0.0
    %756 = vmatprep.subr.mxu0 0.0
    %757 = vmatpush1.msra.mxu0 0.0
    %758 = vmatprep.subr.mxu0 0.0
    %759 = vmatpush1.msra.mxu0 0.0
    %760 = vmatprep.subr.mxu0 0.0
    %761 = vmatpush1.msra.mxu0 0.0
    %762 = vmatprep.subr.mxu0 0.0
    %763 = vmatpush1.msra.mxu0 0.0
    %764 = vmatprep.subr.mxu0 0.0
    %765 = vmatpush1.msra.mxu0 0.0
    %766 = vmatprep.subr.mxu0 0.0
    %767 = vmatpush1.msra.mxu0 0.0
    %768 = vmatprep.subr.mxu0 0.0
    %769 = vmatpush1.msra.mxu0 0.0
    %770 = vmatprep.subr.mxu0 0.0
    %771 = vmatpush1.msra.mxu0 0.0
    %772 = vmatprep.subr.mxu0 0.0
    %773 = vmatpush1.msra.mxu0 0.0
    %774 = vmatprep.subr.mxu0 0.0
    %775 = vmatpush1.msra.mxu0 0.0
    %776 = vmatprep.subr.mxu0 0.0
    %777 = vmatpush1.msra.mxu0 0.0
    %778 = vmatprep.subr.mxu0 0.0
    %779 = vmatpush1.msra.mxu0 0.0
    %780 = vmatprep.subr.mxu0 0.0
    %781 = vmatpush1.msra.mxu0 0.0
    %782 = vmatprep.subr.mxu0 0.0
    %783 = vmatpush1.msra.mxu0 0.0
    %784 = vmatprep.subr.mxu0 0.0
    %785 = vmatpush1.msra.mxu0 0.0
    %786 = vmatprep.subr.mxu0 0.0
    %787 = vmatpush1.msra.mxu0 0.0
    %788 = vmatprep.subr.mxu0 0.0
    %789 = vmatpush1.msra.mxu0 0.0
    %790 = vmatprep.subr.mxu0 0.0
    %791 = vmatpush1.msra.mxu0 0.0
    %792 = vmatprep.subr.mxu0 0.0
    %793 = vmatpush1.msra.mxu0 0.0
    %794 = vmatprep.subr.mxu0 0.0
    %795 = vmatpush1.msra.mxu0 0.0
    %796 = vmatprep.subr.mxu0 0.0
    %797 = vmatpush1.msra.mxu0 0.0
    %798 = vmatprep.subr.mxu0 0.0
    %799 = vmatpush1.msra.mxu0 0.0
    %800 = vmatprep.subr.mxu0 0.0
    %801 = vmatpush1.msra.mxu0 0.0
    %802 = vmatprep.subr.mxu0 0.0
    %803 = vmatpush1.msra.mxu0 0.0
    %804 = vmatprep.subr.mxu0 0.0
    %805 = vmatpush1.msra.mxu0 0.0
    %806 = vmatprep.subr.mxu0 0.0
    %807 = vmatpush1.msra.mxu0 0.0
    %808 = vmatprep.subr.mxu0 0.0
    %809 = vmatpush1.msra.mxu0 0.0
    %810 = vmatprep.mubr.f32.mxu0 0.0
    %811 = vmatmul.mubr.f32.gmra.mrb[0].mxu0 %v571
    %v812 = vpop.f32.mrb[0].mxu0
    %v813 = vadd.f32 0.0, %v812
    %v814 = vpop.f32.mrb[0].mxu0
    %815 = vdwg.mxu0
    %v817 = vrot.slane %v813, 6
    %v819 = vadd.f32 %v184, %v817
    %v820 = vxor.u32 %v819, 2147483648
    %v821 = vmul.f32 %v820, 1.442695
    %v822 = vpow.pop %v821
    %v823 = vadd.f32 %v822, 1.0
    %v824 = vrcp.pop %v823
    %v825 = vmul.f32 1.0, %v824
    %v826 = vmul.f32 %v825, 2.0
    %v827 = vsub.f32 %v826, 1.0
    %v829 = vrot.slane %v560, 7
    %v831 = vmul.f32 %v825, %v829
    %833 = vrot.lane.b32.xlu0 %v827, 64
    %v834 = vpop.permute.xlu0 %833
    %v836 = vmul.f32 %v825, %v834
    %838 = vrot.lane.b32.xlu0 %v836, 32
    %v839 = vpop.permute.xlu0 %838
    %v841 = vadd.f32 %v831, %v839
    %v842 = vtanh.pop %v841
    %844 = vrot.lane.b32.xlu0 %v842, 64
    %v845 = vpop.permute.xlu0 %844
    %v847 = vmul.f32 %v825, %v845
    %v849 = vrot.slane %v847, 2
    %850 = vrot.lane.b32.xlu0 %v849, 32
    %v851 = vpop.permute.xlu0 %850
    %v852 = vsel %vm187, %v851, 0
    %854 = vmatprep.subr.mxu0 0.0
    %855 = vmatpush1.msra.mxu0 %v89
    %856 = vmatprep.subr.mxu0 0.0
    %857 = vmatpush1.msra.mxu0 %v90
    %858 = vmatprep.subr.mxu0 0.0
    %859 = vmatpush1.msra.mxu0 %v91
    %860 = vmatprep.subr.mxu0 0.0
    %861 = vmatpush1.msra.mxu0 %v92
    %862 = vmatprep.subr.mxu0 0.0
    %863 = vmatpush1.msra.mxu0 0.0
    %864 = vmatprep.subr.mxu0 0.0
    %865 = vmatpush1.msra.mxu0 0.0
    %866 = vmatprep.subr.mxu0 0.0
    %867 = vmatpush1.msra.mxu0 0.0
    %868 = vmatprep.subr.mxu0 0.0
    %869 = vmatpush1.msra.mxu0 0.0
    %870 = vmatprep.subr.mxu0 0.0
    %871 = vmatpush1.msra.mxu0 0.0
    %872 = vmatprep.subr.mxu0 0.0
    %873 = vmatpush1.msra.mxu0 0.0
    %874 = vmatprep.subr.mxu0 0.0
    %875 = vmatpush1.msra.mxu0 0.0
    %876 = vmatprep.subr.mxu0 0.0
    %877 = vmatpush1.msra.mxu0 0.0
    %878 = vmatprep.subr.mxu0 0.0
    %879 = vmatpush1.msra.mxu0 0.0
    %880 = vmatprep.subr.mxu0 0.0
    %881 = vmatpush1.msra.mxu0 0.0
    %882 = vmatprep.subr.mxu0 0.0
    %883 = vmatpush1.msra.mxu0 0.0
    %884 = vmatprep.subr.mxu0 0.0
    %885 = vmatpush1.msra.mxu0 0.0
    %886 = vmatprep.subr.mxu0 0.0
    %887 = vmatpush1.msra.mxu0 0.0
    %888 = vmatprep.subr.mxu0 0.0
    %889 = vmatpush1.msra.mxu0 0.0
    %890 = vmatprep.subr.mxu0 0.0
    %891 = vmatpush1.msra.mxu0 0.0
    %892 = vmatprep.subr.mxu0 0.0
    %893 = vmatpush1.msra.mxu0 0.0
    %894 = vmatprep.subr.mxu0 0.0
    %895 = vmatpush1.msra.mxu0 0.0
    %896 = vmatprep.subr.mxu0 0.0
    %897 = vmatpush1.msra.mxu0 0.0
    %898 = vmatprep.subr.mxu0 0.0
    %899 = vmatpush1.msra.mxu0 0.0
    %900 = vmatprep.subr.mxu0 0.0
    %901 = vmatpush1.msra.mxu0 0.0
    %902 = vmatprep.subr.mxu0 0.0
    %903 = vmatpush1.msra.mxu0 0.0
    %904 = vmatprep.subr.mxu0 0.0
    %905 = vmatpush1.msra.mxu0 0.0
    %906 = vmatprep.subr.mxu0 0.0
    %907 = vmatpush1.msra.mxu0 0.0
    %908 = vmatprep.subr.mxu0 0.0
    %909 = vmatpush1.msra.mxu0 0.0
    %910 = vmatprep.subr.mxu0 0.0
    %911 = vmatpush1.msra.mxu0 0.0
    %912 = vmatprep.subr.mxu0 0.0
    %913 = vmatpush1.msra.mxu0 0.0
    %914 = vmatprep.subr.mxu0 0.0
    %915 = vmatpush1.msra.mxu0 0.0
    %916 = vmatprep.subr.mxu0 0.0
    %917 = vmatpush1.msra.mxu0 0.0
    %918 = vmatprep.mubr.f32.mxu0 0.0
    %919 = vmatmul.mubr.f32.gmra.mrb[0].mxu0 %v852
    %v920 = vpop.f32.mrb[0].mxu0
    %v921 = vadd.f32 %v743, %v920
    %v922 = vpop.f32.mrb[0].mxu0
    %923 = vdwg.mxu0
    %v924 = vadd.f32 %v921, %v97
    %v925 = vxor.u32 %v924, 2147483648
    %v926 = vmul.f32 %v925, 1.442695
    %v927 = vpow.pop %v926
    %v928 = vadd.f32 %v927, 1.0
    %v929 = vrcp.pop %v928
    %v930 = vmul.f32 1.0, %v929
    %v931 = vmul.f32 %v930, 2.0
    %v932 = vsub.f32 %v931, 1.0
    %v933 = vmul.f32 %v930, %v662
    %935 = vrot.lane.b32.xlu0 %v932, 64
    %v936 = vpop.permute.xlu0 %935
    %v938 = vmul.f32 %v930, %v936
    %940 = vrot.lane.b32.xlu0 %v938, 32
    %v941 = vpop.permute.xlu0 %940
    %v943 = vadd.f32 %v933, %v941
    %v944 = vtanh.pop %v943
    %946 = vrot.lane.b32.xlu0 %v944, 64
    %v947 = vpop.permute.xlu0 %946
    %v949 = vmul.f32 %v930, %v947
    %951 = vrot.lane.b32.xlu0 %v949, 32
    %v952 = vpop.permute.xlu0 %951
    %954 = vst.msk [vmem:[#allocation2 + $0x2] sm:$0x1] %vm391, %v952
    %v955 = vsel %vm187, %v952, 0
    %957 = vmatprep.subr.mxu0 0.0
    %958 = vmatpush1.msra.mxu0 %v93
    %959 = vmatprep.subr.mxu0 0.0
    %960 = vmatpush1.msra.mxu0 %v94
    %961 = vmatprep.subr.mxu0 0.0
    %962 = vmatpush1.msra.mxu0 %v95
    %963 = vmatprep.subr.mxu0 0.0
    %964 = vmatpush1.msra.mxu0 %v96
    %965 = vmatprep.subr.mxu0 0.0
    %966 = vmatpush1.msra.mxu0 0.0
    %967 = vmatprep.subr.mxu0 0.0
    %968 = vmatpush1.msra.mxu0 0.0
    %969 = vmatprep.subr.mxu0 0.0
    %970 = vmatpush1.msra.mxu0 0.0
    %971 = vmatprep.subr.mxu0 0.0
    %972 = vmatpush1.msra.mxu0 0.0
    %973 = vmatprep.subr.mxu0 0.0
    %974 = vmatpush1.msra.mxu0 0.0
    %975 = vmatprep.subr.mxu0 0.0
    %976 = vmatpush1.msra.mxu0 0.0
    %977 = vmatprep.subr.mxu0 0.0
    %978 = vmatpush1.msra.mxu0 0.0
    %979 = vmatprep.subr.mxu0 0.0
    %980 = vmatpush1.msra.mxu0 0.0
    %981 = vmatprep.subr.mxu0 0.0
    %982 = vmatpush1.msra.mxu0 0.0
    %983 = vmatprep.subr.mxu0 0.0
    %984 = vmatpush1.msra.mxu0 0.0
    %985 = vmatprep.subr.mxu0 0.0
    %986 = vmatpush1.msra.mxu0 0.0
    %987 = vmatprep.subr.mxu0 0.0
    %988 = vmatpush1.msra.mxu0 0.0
    %989 = vmatprep.subr.mxu0 0.0
    %990 = vmatpush1.msra.mxu0 0.0
    %991 = vmatprep.subr.mxu0 0.0
    %992 = vmatpush1.msra.mxu0 0.0
    %993 = vmatprep.subr.mxu0 0.0
    %994 = vmatpush1.msra.mxu0 0.0
    %995 = vmatprep.subr.mxu0 0.0
    %996 = vmatpush1.msra.mxu0 0.0
    %997 = vmatprep.subr.mxu0 0.0
    %998 = vmatpush1.msra.mxu0 0.0
    %999 = vmatprep.subr.mxu0 0.0
    %1000 = vmatpush1.msra.mxu0 0.0
    %1001 = vmatprep.subr.mxu0 0.0
    %1002 = vmatpush1.msra.mxu0 0.0
    %1003 = vmatprep.subr.mxu0 0.0
    %1004 = vmatpush1.msra.mxu0 0.0
    %1005 = vmatprep.subr.mxu0 0.0
    %1006 = vmatpush1.msra.mxu0 0.0
    %1007 = vmatprep.subr.mxu0 0.0
    %1008 = vmatpush1.msra.mxu0 0.0
    %1009 = vmatprep.subr.mxu0 0.0
    %1010 = vmatpush1.msra.mxu0 0.0
    %1011 = vmatprep.subr.mxu0 0.0
    %1012 = vmatpush1.msra.mxu0 0.0
    %1013 = vmatprep.subr.mxu0 0.0
    %1014 = vmatpush1.msra.mxu0 0.0
    %1015 = vmatprep.subr.mxu0 0.0
    %1016 = vmatpush1.msra.mxu0 0.0
    %1017 = vmatprep.subr.mxu0 0.0
    %1018 = vmatpush1.msra.mxu0 0.0
    %1019 = vmatprep.subr.mxu0 0.0
    %1020 = vmatpush1.msra.mxu0 0.0
    %1021 = vmatprep.mubr.f32.mxu0 0.0
    %1022 = vmatmul.mubr.f32.gmra.mrb[0].mxu0 %v955
    %v1023 = vpop.f32.mrb[0].mxu0
    %v1024 = vadd.f32 0.0, %v1023
    %v1025 = vpop.f32.mrb[0].mxu0
    %1026 = vdwg.mxu0
    %1027 = vmatprep.subr.mxu0 0.0
    %1028 = vmatpush1.msra.mxu0 %v84
    %1029 = vmatprep.subr.mxu0 0.0
    %1030 = vmatpush1.msra.mxu0 %v85
    %1031 = vmatprep.subr.mxu0 0.0
    %1032 = vmatpush1.msra.mxu0 %v86
    %1033 = vmatprep.subr.mxu0 0.0
    %1034 = vmatpush1.msra.mxu0 %v87
    %1035 = vmatprep.subr.mxu0 0.0
    %1036 = vmatpush1.msra.mxu0 0.0
    %1037 = vmatprep.subr.mxu0 0.0
    %1038 = vmatpush1.msra.mxu0 0.0
    %1039 = vmatprep.subr.mxu0 0.0
    %1040 = vmatpush1.msra.mxu0 0.0
    %1041 = vmatprep.subr.mxu0 0.0
    %1042 = vmatpush1.msra.mxu0 0.0
    %1043 = vmatprep.subr.mxu0 0.0
    %1044 = vmatpush1.msra.mxu0 0.0
    %1045 = vmatprep.subr.mxu0 0.0
    %1046 = vmatpush1.msra.mxu0 0.0
    %1047 = vmatprep.subr.mxu0 0.0
    %1048 = vmatpush1.msra.mxu0 0.0
    %1049 = vmatprep.subr.mxu0 0.0
    %1050 = vmatpush1.msra.mxu0 0.0
    %1051 = vmatprep.subr.mxu0 0.0
    %1052 = vmatpush1.msra.mxu0 0.0
    %1053 = vmatprep.subr.mxu0 0.0
    %1054 = vmatpush1.msra.mxu0 0.0
    %1055 = vmatprep.subr.mxu0 0.0
    %1056 = vmatpush1.msra.mxu0 0.0
    %1057 = vmatprep.subr.mxu0 0.0
    %1058 = vmatpush1.msra.mxu0 0.0
    %1059 = vmatprep.subr.mxu0 0.0
    %1060 = vmatpush1.msra.mxu0 0.0
    %1061 = vmatprep.subr.mxu0 0.0
    %1062 = vmatpush1.msra.mxu0 0.0
    %1063 = vmatprep.subr.mxu0 0.0
    %1064 = vmatpush1.msra.mxu0 0.0
    %1065 = vmatprep.subr.mxu0 0.0
    %1066 = vmatpush1.msra.mxu0 0.0
    %1067 = vmatprep.subr.mxu0 0.0
    %1068 = vmatpush1.msra.mxu0 0.0
    %1069 = vmatprep.subr.mxu0 0.0
    %1070 = vmatpush1.msra.mxu0 0.0
    %1071 = vmatprep.subr.mxu0 0.0
    %1072 = vmatpush1.msra.mxu0 0.0
    %1073 = vmatprep.subr.mxu0 0.0
    %1074 = vmatpush1.msra.mxu0 0.0
    %1075 = vmatprep.subr.mxu0 0.0
    %1076 = vmatpush1.msra.mxu0 0.0
    %1077 = vmatprep.subr.mxu0 0.0
    %1078 = vmatpush1.msra.mxu0 0.0
    %1079 = vmatprep.subr.mxu0 0.0
    %1080 = vmatpush1.msra.mxu0 0.0
    %1081 = vmatprep.subr.mxu0 0.0
    %1082 = vmatpush1.msra.mxu0 0.0
    %1083 = vmatprep.subr.mxu0 0.0
    %1084 = vmatpush1.msra.mxu0 0.0
    %1085 = vmatprep.subr.mxu0 0.0
    %1086 = vmatpush1.msra.mxu0 0.0
    %1087 = vmatprep.subr.mxu0 0.0
    %1088 = vmatpush1.msra.mxu0 0.0
    %1089 = vmatprep.subr.mxu0 0.0
    %1090 = vmatpush1.msra.mxu0 0.0
    %1091 = vmatprep.mubr.f32.mxu0 0.0
    %1092 = vmatmul.mubr.f32.gmra.mrb[0].mxu0 %v852
    %v1093 = vpop.f32.mrb[0].mxu0
    %v1094 = vadd.f32 0.0, %v1093
    %v1095 = vpop.f32.mrb[0].mxu0
    %1096 = vdwg.mxu0
    %v1098 = vrot.slane %v1094, 5
    %v1100 = vadd.f32 %v184, %v1098
    %v1101 = vxor.u32 %v1100, 2147483648
    %v1102 = vmul.f32 %v1101, 1.442695
    %v1103 = vpow.pop %v1102
    %v1104 = vadd.f32 %v1103, 1.0
    %v1105 = vrcp.pop %v1104
    %v1106 = vmul.f32 1.0, %v1105
    %v1107 = vmul.f32 %v1106, 2.0
    %v1108 = vsub.f32 %v1107, 1.0
    %v1110 = vrot.slane %v841, 7
    %v1112 = vmul.f32 %v1106, %v1110
    %1114 = vrot.lane.b32.xlu0 %v1108, 64
    %v1115 = vpop.permute.xlu0 %1114
    %v1117 = vmul.f32 %v1106, %v1115
    %1119 = vrot.lane.b32.xlu0 %v1117, 32
    %v1120 = vpop.permute.xlu0 %1119
    %v1122 = vadd.f32 %v1112, %v1120
    %v1123 = vtanh.pop %v1122
    %1125 = vrot.lane.b32.xlu0 %v1123, 64
    %v1126 = vpop.permute.xlu0 %1125
    %v1128 = vmul.f32 %v1106, %v1126
    %v1130 = vrot.slane %v1128, 3
    %1131 = vrot.lane.b32.xlu0 %v1130, 32
    %v1132 = vpop.permute.xlu0 %1131
    %v1133 = vsel %vm187, %v1132, 0
    %1135 = vmatprep.subr.mxu0 0.0
    %1136 = vmatpush1.msra.mxu0 %v89
    %1137 = vmatprep.subr.mxu0 0.0
    %1138 = vmatpush1.msra.mxu0 %v90
    %1139 = vmatprep.subr.mxu0 0.0
    %1140 = vmatpush1.msra.mxu0 %v91
    %1141 = vmatprep.subr.mxu0 0.0
    %1142 = vmatpush1.msra.mxu0 %v92
    %1143 = vmatprep.subr.mxu0 0.0
    %1144 = vmatpush1.msra.mxu0 0.0
    %1145 = vmatprep.subr.mxu0 0.0
    %1146 = vmatpush1.msra.mxu0 0.0
    %1147 = vmatprep.subr.mxu0 0.0
    %1148 = vmatpush1.msra.mxu0 0.0
    %1149 = vmatprep.subr.mxu0 0.0
    %1150 = vmatpush1.msra.mxu0 0.0
    %1151 = vmatprep.subr.mxu0 0.0
    %1152 = vmatpush1.msra.mxu0 0.0
    %1153 = vmatprep.subr.mxu0 0.0
    %1154 = vmatpush1.msra.mxu0 0.0
    %1155 = vmatprep.subr.mxu0 0.0
    %1156 = vmatpush1.msra.mxu0 0.0
    %1157 = vmatprep.subr.mxu0 0.0
    %1158 = vmatpush1.msra.mxu0 0.0
    %1159 = vmatprep.subr.mxu0 0.0
    %1160 = vmatpush1.msra.mxu0 0.0
    %1161 = vmatprep.subr.mxu0 0.0
    %1162 = vmatpush1.msra.mxu0 0.0
    %1163 = vmatprep.subr.mxu0 0.0
    %1164 = vmatpush1.msra.mxu0 0.0
    %1165 = vmatprep.subr.mxu0 0.0
    %1166 = vmatpush1.msra.mxu0 0.0
    %1167 = vmatprep.subr.mxu0 0.0
    %1168 = vmatpush1.msra.mxu0 0.0
    %1169 = vmatprep.subr.mxu0 0.0
    %1170 = vmatpush1.msra.mxu0 0.0
    %1171 = vmatprep.subr.mxu0 0.0
    %1172 = vmatpush1.msra.mxu0 0.0
    %1173 = vmatprep.subr.mxu0 0.0
    %1174 = vmatpush1.msra.mxu0 0.0
    %1175 = vmatprep.subr.mxu0 0.0
    %1176 = vmatpush1.msra.mxu0 0.0
    %1177 = vmatprep.subr.mxu0 0.0
    %1178 = vmatpush1.msra.mxu0 0.0
    %1179 = vmatprep.subr.mxu0 0.0
    %1180 = vmatpush1.msra.mxu0 0.0
    %1181 = vmatprep.subr.mxu0 0.0
    %1182 = vmatpush1.msra.mxu0 0.0
    %1183 = vmatprep.subr.mxu0 0.0
    %1184 = vmatpush1.msra.mxu0 0.0
    %1185 = vmatprep.subr.mxu0 0.0
    %1186 = vmatpush1.msra.mxu0 0.0
    %1187 = vmatprep.subr.mxu0 0.0
    %1188 = vmatpush1.msra.mxu0 0.0
    %1189 = vmatprep.subr.mxu0 0.0
    %1190 = vmatpush1.msra.mxu0 0.0
    %1191 = vmatprep.subr.mxu0 0.0
    %1192 = vmatpush1.msra.mxu0 0.0
    %1193 = vmatprep.subr.mxu0 0.0
    %1194 = vmatpush1.msra.mxu0 0.0
    %1195 = vmatprep.subr.mxu0 0.0
    %1196 = vmatpush1.msra.mxu0 0.0
    %1197 = vmatprep.subr.mxu0 0.0
    %1198 = vmatpush1.msra.mxu0 0.0
    %1199 = vmatprep.mubr.f32.mxu0 0.0
    %1200 = vmatmul.mubr.f32.gmra.mrb[0].mxu0 %v1133
    %v1201 = vpop.f32.mrb[0].mxu0
    %v1202 = vadd.f32 %v1024, %v1201
    %v1203 = vpop.f32.mrb[0].mxu0
    %1204 = vdwg.mxu0
    %v1205 = vadd.f32 %v1202, %v97
    %v1206 = vxor.u32 %v1205, 2147483648
    %v1207 = vmul.f32 %v1206, 1.442695
    %v1208 = vpow.pop %v1207
    %v1209 = vadd.f32 %v1208, 1.0
    %v1210 = vrcp.pop %v1209
    %v1211 = vmul.f32 1.0, %v1210
    %v1212 = vmul.f32 %v1211, 2.0
    %v1213 = vsub.f32 %v1212, 1.0
    %v1214 = vmul.f32 %v1211, %v943
    %1216 = vrot.lane.b32.xlu0 %v1213, 64
    %v1217 = vpop.permute.xlu0 %1216
    %v1219 = vmul.f32 %v1211, %v1217
    %1221 = vrot.lane.b32.xlu0 %v1219, 32
    %v1222 = vpop.permute.xlu0 %1221
    %v1224 = vadd.f32 %v1214, %v1222
    %v1225 = vtanh.pop %v1224
    %1227 = vrot.lane.b32.xlu0 %v1225, 64
    %v1228 = vpop.permute.xlu0 %1227
    %v1230 = vmul.f32 %v1211, %v1228
    %1232 = vrot.lane.b32.xlu0 %v1230, 32
    %v1233 = vpop.permute.xlu0 %1232
    %1235 = vst.msk [vmem:[#allocation2 + $0x3] sm:$0x1] %vm391, %v1233
    %v1236 = vsel %vm187, %v1233, 0
    %1238 = vmatprep.subr.mxu0 0.0
    %1239 = vmatpush1.msra.mxu0 %v93
    %1240 = vmatprep.subr.mxu0 0.0
    %1241 = vmatpush1.msra.mxu0 %v94
    %1242 = vmatprep.subr.mxu0 0.0
    %1243 = vmatpush1.msra.mxu0 %v95
    %1244 = vmatprep.subr.mxu0 0.0
    %1245 = vmatpush1.msra.mxu0 %v96
    %1246 = vmatprep.subr.mxu0 0.0
    %1247 = vmatpush1.msra.mxu0 0.0
    %1248 = vmatprep.subr.mxu0 0.0
    %1249 = vmatpush1.msra.mxu0 0.0
    %1250 = vmatprep.subr.mxu0 0.0
    %1251 = vmatpush1.msra.mxu0 0.0
    %1252 = vmatprep.subr.mxu0 0.0
    %1253 = vmatpush1.msra.mxu0 0.0
    %1254 = vmatprep.subr.mxu0 0.0
    %1255 = vmatpush1.msra.mxu0 0.0
    %1256 = vmatprep.subr.mxu0 0.0
    %1257 = vmatpush1.msra.mxu0 0.0
    %1258 = vmatprep.subr.mxu0 0.0
    %1259 = vmatpush1.msra.mxu0 0.0
    %1260 = vmatprep.subr.mxu0 0.0
    %1261 = vmatpush1.msra.mxu0 0.0
    %1262 = vmatprep.subr.mxu0 0.0
    %1263 = vmatpush1.msra.mxu0 0.0
    %1264 = vmatprep.subr.mxu0 0.0
    %1265 = vmatpush1.msra.mxu0 0.0
    %1266 = vmatprep.subr.mxu0 0.0
    %1267 = vmatpush1.msra.mxu0 0.0
    %1268 = vmatprep.subr.mxu0 0.0
    %1269 = vmatpush1.msra.mxu0 0.0
    %1270 = vmatprep.subr.mxu0 0.0
    %1271 = vmatpush1.msra.mxu0 0.0
    %1272 = vmatprep.subr.mxu0 0.0
    %1273 = vmatpush1.msra.mxu0 0.0
    %1274 = vmatprep.subr.mxu0 0.0
    %1275 = vmatpush1.msra.mxu0 0.0
    %1276 = vmatprep.subr.mxu0 0.0
    %1277 = vmatpush1.msra.mxu0 0.0
    %1278 = vmatprep.subr.mxu0 0.0
    %1279 = vmatpush1.msra.mxu0 0.0
    %1280 = vmatprep.subr.mxu0 0.0
    %1281 = vmatpush1.msra.mxu0 0.0
    %1282 = vmatprep.subr.mxu0 0.0
    %1283 = vmatpush1.msra.mxu0 0.0
    %1284 = vmatprep.subr.mxu0 0.0
    %1285 = vmatpush1.msra.mxu0 0.0
    %1286 = vmatprep.subr.mxu0 0.0
    %1287 = vmatpush1.msra.mxu0 0.0
    %1288 = vmatprep.subr.mxu0 0.0
    %1289 = vmatpush1.msra.mxu0 0.0
    %1290 = vmatprep.subr.mxu0 0.0
    %1291 = vmatpush1.msra.mxu0 0.0
    %1292 = vmatprep.subr.mxu0 0.0
    %1293 = vmatpush1.msra.mxu0 0.0
    %1294 = vmatprep.subr.mxu0 0.0
    %1295 = vmatpush1.msra.mxu0 0.0
    %1296 = vmatprep.subr.mxu0 0.0
    %1297 = vmatpush1.msra.mxu0 0.0
    %1298 = vmatprep.subr.mxu0 0.0
    %1299 = vmatpush1.msra.mxu0 0.0
    %1300 = vmatprep.subr.mxu0 0.0
    %1301 = vmatpush1.msra.mxu0 0.0
    %1302 = vmatprep.mubr.f32.mxu0 0.0
    %1303 = vmatmul.mubr.f32.gmra.mrb[0].mxu0 %v1236
    %v1304 = vpop.f32.mrb[0].mxu0
    %v1305 = vadd.f32 0.0, %v1304
    %v1306 = vpop.f32.mrb[0].mxu0
    %1307 = vdwg.mxu0
    %1308 = vmatprep.subr.mxu0 0.0
    %1309 = vmatpush1.msra.mxu0 %v84
    %1310 = vmatprep.subr.mxu0 0.0
    %1311 = vmatpush1.msra.mxu0 %v85
    %1312 = vmatprep.subr.mxu0 0.0
    %1313 = vmatpush1.msra.mxu0 %v86
    %1314 = vmatprep.subr.mxu0 0.0
    %1315 = vmatpush1.msra.mxu0 %v87
    %1316 = vmatprep.subr.mxu0 0.0
    %1317 = vmatpush1.msra.mxu0 0.0
    %1318 = vmatprep.subr.mxu0 0.0
    %1319 = vmatpush1.msra.mxu0 0.0
    %1320 = vmatprep.subr.mxu0 0.0
    %1321 = vmatpush1.msra.mxu0 0.0
    %1322 = vmatprep.subr.mxu0 0.0
    %1323 = vmatpush1.msra.mxu0 0.0
    %1324 = vmatprep.subr.mxu0 0.0
    %1325 = vmatpush1.msra.mxu0 0.0
    %1326 = vmatprep.subr.mxu0 0.0
    %1327 = vmatpush1.msra.mxu0 0.0
    %1328 = vmatprep.subr.mxu0 0.0
    %1329 = vmatpush1.msra.mxu0 0.0
    %1330 = vmatprep.subr.mxu0 0.0
    %1331 = vmatpush1.msra.mxu0 0.0
    %1332 = vmatprep.subr.mxu0 0.0
    %1333 = vmatpush1.msra.mxu0 0.0
    %1334 = vmatprep.subr.mxu0 0.0
    %1335 = vmatpush1.msra.mxu0 0.0
    %1336 = vmatprep.subr.mxu0 0.0
    %1337 = vmatpush1.msra.mxu0 0.0
    %1338 = vmatprep.subr.mxu0 0.0
    %1339 = vmatpush1.msra.mxu0 0.0
    %1340 = vmatprep.subr.mxu0 0.0
    %1341 = vmatpush1.msra.mxu0 0.0
    %1342 = vmatprep.subr.mxu0 0.0
    %1343 = vmatpush1.msra.mxu0 0.0
    %1344 = vmatprep.subr.mxu0 0.0
    %1345 = vmatpush1.msra.mxu0 0.0
    %1346 = vmatprep.subr.mxu0 0.0
    %1347 = vmatpush1.msra.mxu0 0.0
    %1348 = vmatprep.subr.mxu0 0.0
    %1349 = vmatpush1.msra.mxu0 0.0
    %1350 = vmatprep.subr.mxu0 0.0
    %1351 = vmatpush1.msra.mxu0 0.0
    %1352 = vmatprep.subr.mxu0 0.0
    %1353 = vmatpush1.msra.mxu0 0.0
    %1354 = vmatprep.subr.mxu0 0.0
    %1355 = vmatpush1.msra.mxu0 0.0
    %1356 = vmatprep.subr.mxu0 0.0
    %1357 = vmatpush1.msra.mxu0 0.0
    %1358 = vmatprep.subr.mxu0 0.0
    %1359 = vmatpush1.msra.mxu0 0.0
    %1360 = vmatprep.subr.mxu0 0.0
    %1361 = vmatpush1.msra.mxu0 0.0
    %1362 = vmatprep.subr.mxu0 0.0
    %1363 = vmatpush1.msra.mxu0 0.0
    %1364 = vmatprep.subr.mxu0 0.0
    %1365 = vmatpush1.msra.mxu0 0.0
    %1366 = vmatprep.subr.mxu0 0.0
    %1367 = vmatpush1.msra.mxu0 0.0
    %1368 = vmatprep.subr.mxu0 0.0
    %1369 = vmatpush1.msra.mxu0 0.0
    %1370 = vmatprep.subr.mxu0 0.0
    %1371 = vmatpush1.msra.mxu0 0.0
    %1372 = vmatprep.mubr.f32.mxu0 0.0
    %1373 = vmatmul.mubr.f32.gmra.mrb[0].mxu0 %v1133
    %v1374 = vpop.f32.mrb[0].mxu0
    %v1375 = vadd.f32 0.0, %v1374
    %v1376 = vpop.f32.mrb[0].mxu0
    %1377 = vdwg.mxu0
    %v1379 = vrot.slane %v1375, 4
    %v1381 = vadd.f32 %v184, %v1379
    %v1382 = vxor.u32 %v1381, 2147483648
    %v1383 = vmul.f32 %v1382, 1.442695
    %v1384 = vpow.pop %v1383
    %v1385 = vadd.f32 %v1384, 1.0
    %v1386 = vrcp.pop %v1385
    %v1387 = vmul.f32 1.0, %v1386
    %v1388 = vmul.f32 %v1387, 2.0
    %v1389 = vsub.f32 %v1388, 1.0
    %v1391 = vrot.slane %v1122, 7
    %v1393 = vmul.f32 %v1387, %v1391
    %1395 = vrot.lane.b32.xlu0 %v1389, 64
    %v1396 = vpop.permute.xlu0 %1395
    %v1398 = vmul.f32 %v1387, %v1396
    %1400 = vrot.lane.b32.xlu0 %v1398, 32
    %v1401 = vpop.permute.xlu0 %1400
    %v1403 = vadd.f32 %v1393, %v1401
    %v1404 = vtanh.pop %v1403
    %1406 = vrot.lane.b32.xlu0 %v1404, 64
    %v1407 = vpop.permute.xlu0 %1406
    %v1409 = vmul.f32 %v1387, %v1407
    %v1411 = vrot.slane %v1409, 4
    %1412 = vrot.lane.b32.xlu0 %v1411, 32
    %v1413 = vpop.permute.xlu0 %1412
    %v1414 = vsel %vm187, %v1413, 0
    %1416 = vmatprep.subr.mxu0 0.0
    %1417 = vmatpush1.msra.mxu0 %v89
    %1418 = vmatprep.subr.mxu0 0.0
    %1419 = vmatpush1.msra.mxu0 %v90
    %1420 = vmatprep.subr.mxu0 0.0
    %1421 = vmatpush1.msra.mxu0 %v91
    %1422 = vmatprep.subr.mxu0 0.0
    %1423 = vmatpush1.msra.mxu0 %v92
    %1424 = vmatprep.subr.mxu0 0.0
    %1425 = vmatpush1.msra.mxu0 0.0
    %1426 = vmatprep.subr.mxu0 0.0
    %1427 = vmatpush1.msra.mxu0 0.0
    %1428 = vmatprep.subr.mxu0 0.0
    %1429 = vmatpush1.msra.mxu0 0.0
    %1430 = vmatprep.subr.mxu0 0.0
    %1431 = vmatpush1.msra.mxu0 0.0
    %1432 = vmatprep.subr.mxu0 0.0
    %1433 = vmatpush1.msra.mxu0 0.0
    %1434 = vmatprep.subr.mxu0 0.0
    %1435 = vmatpush1.msra.mxu0 0.0
    %1436 = vmatprep.subr.mxu0 0.0
    %1437 = vmatpush1.msra.mxu0 0.0
    %1438 = vmatprep.subr.mxu0 0.0
    %1439 = vmatpush1.msra.mxu0 0.0
    %1440 = vmatprep.subr.mxu0 0.0
    %1441 = vmatpush1.msra.mxu0 0.0
    %1442 = vmatprep.subr.mxu0 0.0
    %1443 = vmatpush1.msra.mxu0 0.0
    %1444 = vmatprep.subr.mxu0 0.0
    %1445 = vmatpush1.msra.mxu0 0.0
    %1446 = vmatprep.subr.mxu0 0.0
    %1447 = vmatpush1.msra.mxu0 0.0
    %1448 = vmatprep.subr.mxu0 0.0
    %1449 = vmatpush1.msra.mxu0 0.0
    %1450 = vmatprep.subr.mxu0 0.0
    %1451 = vmatpush1.msra.mxu0 0.0
    %1452 = vmatprep.subr.mxu0 0.0
    %1453 = vmatpush1.msra.mxu0 0.0
    %1454 = vmatprep.subr.mxu0 0.0
    %1455 = vmatpush1.msra.mxu0 0.0
    %1456 = vmatprep.subr.mxu0 0.0
    %1457 = vmatpush1.msra.mxu0 0.0
    %1458 = vmatprep.subr.mxu0 0.0
    %1459 = vmatpush1.msra.mxu0 0.0
    %1460 = vmatprep.subr.mxu0 0.0
    %1461 = vmatpush1.msra.mxu0 0.0
    %1462 = vmatprep.subr.mxu0 0.0
    %1463 = vmatpush1.msra.mxu0 0.0
    %1464 = vmatprep.subr.mxu0 0.0
    %1465 = vmatpush1.msra.mxu0 0.0
    %1466 = vmatprep.subr.mxu0 0.0
    %1467 = vmatpush1.msra.mxu0 0.0
    %1468 = vmatprep.subr.mxu0 0.0
    %1469 = vmatpush1.msra.mxu0 0.0
    %1470 = vmatprep.subr.mxu0 0.0
    %1471 = vmatpush1.msra.mxu0 0.0
    %1472 = vmatprep.subr.mxu0 0.0
    %1473 = vmatpush1.msra.mxu0 0.0
    %1474 = vmatprep.subr.mxu0 0.0
    %1475 = vmatpush1.msra.mxu0 0.0
    %1476 = vmatprep.subr.mxu0 0.0
    %1477 = vmatpush1.msra.mxu0 0.0
    %1478 = vmatprep.subr.mxu0 0.0
    %1479 = vmatpush1.msra.mxu0 0.0
    %1480 = vmatprep.mubr.f32.mxu0 0.0
    %1481 = vmatmul.mubr.f32.gmra.mrb[0].mxu0 %v1414
    %v1482 = vpop.f32.mrb[0].mxu0
    %v1483 = vadd.f32 %v1305, %v1482
    %v1484 = vpop.f32.mrb[0].mxu0
    %1485 = vdwg.mxu0
    %v1486 = vadd.f32 %v1483, %v97
    %v1487 = vxor.u32 %v1486, 2147483648
    %v1488 = vmul.f32 %v1487, 1.442695
    %v1489 = vpow.pop %v1488
    %v1490 = vadd.f32 %v1489, 1.0
    %v1491 = vrcp.pop %v1490
    %v1492 = vmul.f32 1.0, %v1491
    %v1493 = vmul.f32 %v1492, 2.0
    %v1494 = vsub.f32 %v1493, 1.0
    %v1495 = vmul.f32 %v1492, %v1224
    %1497 = vrot.lane.b32.xlu0 %v1494, 64
    %v1498 = vpop.permute.xlu0 %1497
    %v1500 = vmul.f32 %v1492, %v1498
    %1502 = vrot.lane.b32.xlu0 %v1500, 32
    %v1503 = vpop.permute.xlu0 %1502
    %v1505 = vadd.f32 %v1495, %v1503
    %v1506 = vtanh.pop %v1505
    %1508 = vrot.lane.b32.xlu0 %v1506, 64
    %v1509 = vpop.permute.xlu0 %1508
    %v1511 = vmul.f32 %v1492, %v1509
    %1513 = vrot.lane.b32.xlu0 %v1511, 32
    %v1514 = vpop.permute.xlu0 %1513
    %1516 = vst.msk [vmem:[#allocation2 + $0x4] sm:$0x1] %vm391, %v1514
    %v1517 = vsel %vm187, %v1514, 0
    %1519 = vmatprep.subr.mxu0 0.0
    %1520 = vmatpush1.msra.mxu0 %v93
    %1521 = vmatprep.subr.mxu0 0.0
    %1522 = vmatpush1.msra.mxu0 %v94
    %1523 = vmatprep.subr.mxu0 0.0
    %1524 = vmatpush1.msra.mxu0 %v95
    %1525 = vmatprep.subr.mxu0 0.0
    %1526 = vmatpush1.msra.mxu0 %v96
    %1527 = vmatprep.subr.mxu0 0.0
    %1528 = vmatpush1.msra.mxu0 0.0
    %1529 = vmatprep.subr.mxu0 0.0
    %1530 = vmatpush1.msra.mxu0 0.0
    %1531 = vmatprep.subr.mxu0 0.0
    %1532 = vmatpush1.msra.mxu0 0.0
    %1533 = vmatprep.subr.mxu0 0.0
    %1534 = vmatpush1.msra.mxu0 0.0
    %1535 = vmatprep.subr.mxu0 0.0
    %1536 = vmatpush1.msra.mxu0 0.0
    %1537 = vmatprep.subr.mxu0 0.0
    %1538 = vmatpush1.msra.mxu0 0.0
    %1539 = vmatprep.subr.mxu0 0.0
    %1540 = vmatpush1.msra.mxu0 0.0
    %1541 = vmatprep.subr.mxu0 0.0
    %1542 = vmatpush1.msra.mxu0 0.0
    %1543 = vmatprep.subr.mxu0 0.0
    %1544 = vmatpush1.msra.mxu0 0.0
    %1545 = vmatprep.subr.mxu0 0.0
    %1546 = vmatpush1.msra.mxu0 0.0
    %1547 = vmatprep.subr.mxu0 0.0
    %1548 = vmatpush1.msra.mxu0 0.0
    %1549 = vmatprep.subr.mxu0 0.0
    %1550 = vmatpush1.msra.mxu0 0.0
    %1551 = vmatprep.subr.mxu0 0.0
    %1552 = vmatpush1.msra.mxu0 0.0
    %1553 = vmatprep.subr.mxu0 0.0
    %1554 = vmatpush1.msra.mxu0 0.0
    %1555 = vmatprep.subr.mxu0 0.0
    %1556 = vmatpush1.msra.mxu0 0.0
    %1557 = vmatprep.subr.mxu0 0.0
    %1558 = vmatpush1.msra.mxu0 0.0
    %1559 = vmatprep.subr.mxu0 0.0
    %1560 = vmatpush1.msra.mxu0 0.0
    %1561 = vmatprep.subr.mxu0 0.0
    %1562 = vmatpush1.msra.mxu0 0.0
    %1563 = vmatprep.subr.mxu0 0.0
    %1564 = vmatpush1.msra.mxu0 0.0
    %1565 = vmatprep.subr.mxu0 0.0
    %1566 = vmatpush1.msra.mxu0 0.0
    %1567 = vmatprep.subr.mxu0 0.0
    %1568 = vmatpush1.msra.mxu0 0.0
    %1569 = vmatprep.subr.mxu0 0.0
    %1570 = vmatpush1.msra.mxu0 0.0
    %1571 = vmatprep.subr.mxu0 0.0
    %1572 = vmatpush1.msra.mxu0 0.0
    %1573 = vmatprep.subr.mxu0 0.0
    %1574 = vmatpush1.msra.mxu0 0.0
    %1575 = vmatprep.subr.mxu0 0.0
    %1576 = vmatpush1.msra.mxu0 0.0
    %1577 = vmatprep.subr.mxu0 0.0
    %1578 = vmatpush1.msra.mxu0 0.0
    %1579 = vmatprep.subr.mxu0 0.0
    %1580 = vmatpush1.msra.mxu0 0.0
    %1581 = vmatprep.subr.mxu0 0.0
    %1582 = vmatpush1.msra.mxu0 0.0
    %1583 = vmatprep.mubr.f32.mxu0 0.0
    %1584 = vmatmul.mubr.f32.gmra.mrb[0].mxu0 %v1517
    %v1585 = vpop.f32.mrb[0].mxu0
    %v1586 = vadd.f32 0.0, %v1585
    %v1587 = vpop.f32.mrb[0].mxu0
    %1588 = vdwg.mxu0
    %1589 = vmatprep.subr.mxu0 0.0
    %1590 = vmatpush1.msra.mxu0 %v84
    %1591 = vmatprep.subr.mxu0 0.0
    %1592 = vmatpush1.msra.mxu0 %v85
    %1593 = vmatprep.subr.mxu0 0.0
    %1594 = vmatpush1.msra.mxu0 %v86
    %1595 = vmatprep.subr.mxu0 0.0
    %1596 = vmatpush1.msra.mxu0 %v87
    %1597 = vmatprep.subr.mxu0 0.0
    %1598 = vmatpush1.msra.mxu0 0.0
    %1599 = vmatprep.subr.mxu0 0.0
    %1600 = vmatpush1.msra.mxu0 0.0
    %1601 = vmatprep.subr.mxu0 0.0
    %1602 = vmatpush1.msra.mxu0 0.0
    %1603 = vmatprep.subr.mxu0 0.0
    %1604 = vmatpush1.msra.mxu0 0.0
    %1605 = vmatprep.subr.mxu0 0.0
    %1606 = vmatpush1.msra.mxu0 0.0
    %1607 = vmatprep.subr.mxu0 0.0
    %1608 = vmatpush1.msra.mxu0 0.0
    %1609 = vmatprep.subr.mxu0 0.0
    %1610 = vmatpush1.msra.mxu0 0.0
    %1611 = vmatprep.subr.mxu0 0.0
    %1612 = vmatpush1.msra.mxu0 0.0
    %1613 = vmatprep.subr.mxu0 0.0
    %1614 = vmatpush1.msra.mxu0 0.0
    %1615 = vmatprep.subr.mxu0 0.0
    %1616 = vmatpush1.msra.mxu0 0.0
    %1617 = vmatprep.subr.mxu0 0.0
    %1618 = vmatpush1.msra.mxu0 0.0
    %1619 = vmatprep.subr.mxu0 0.0
    %1620 = vmatpush1.msra.mxu0 0.0
    %1621 = vmatprep.subr.mxu0 0.0
    %1622 = vmatpush1.msra.mxu0 0.0
    %1623 = vmatprep.subr.mxu0 0.0
    %1624 = vmatpush1.msra.mxu0 0.0
    %1625 = vmatprep.subr.mxu0 0.0
    %1626 = vmatpush1.msra.mxu0 0.0
    %1627 = vmatprep.subr.mxu0 0.0
    %1628 = vmatpush1.msra.mxu0 0.0
    %1629 = vmatprep.subr.mxu0 0.0
    %1630 = vmatpush1.msra.mxu0 0.0
    %1631 = vmatprep.subr.mxu0 0.0
    %1632 = vmatpush1.msra.mxu0 0.0
    %1633 = vmatprep.subr.mxu0 0.0
    %1634 = vmatpush1.msra.mxu0 0.0
    %1635 = vmatprep.subr.mxu0 0.0
    %1636 = vmatpush1.msra.mxu0 0.0
    %1637 = vmatprep.subr.mxu0 0.0
    %1638 = vmatpush1.msra.mxu0 0.0
    %1639 = vmatprep.subr.mxu0 0.0
    %1640 = vmatpush1.msra.mxu0 0.0
    %1641 = vmatprep.subr.mxu0 0.0
    %1642 = vmatpush1.msra.mxu0 0.0
    %1643 = vmatprep.subr.mxu0 0.0
    %1644 = vmatpush1.msra.mxu0 0.0
    %1645 = vmatprep.subr.mxu0 0.0
    %1646 = vmatpush1.msra.mxu0 0.0
    %1647 = vmatprep.subr.mxu0 0.0
    %1648 = vmatpush1.msra.mxu0 0.0
    %1649 = vmatprep.subr.mxu0 0.0
    %1650 = vmatpush1.msra.mxu0 0.0
    %1651 = vmatprep.subr.mxu0 0.0
    %1652 = vmatpush1.msra.mxu0 0.0
    %1653 = vmatprep.mubr.f32.mxu0 0.0
    %1654 = vmatmul.mubr.f32.gmra.mrb[0].mxu0 %v1414
    %v1655 = vpop.f32.mrb[0].mxu0
    %v1656 = vadd.f32 0.0, %v1655
    %v1657 = vpop.f32.mrb[0].mxu0
    %1658 = vdwg.mxu0
    %v1660 = vrot.slane %v1656, 3
    %v1662 = vadd.f32 %v184, %v1660
    %v1663 = vxor.u32 %v1662, 2147483648
    %v1664 = vmul.f32 %v1663, 1.442695
    %v1665 = vpow.pop %v1664
    %v1666 = vadd.f32 %v1665, 1.0
    %v1667 = vrcp.pop %v1666
    %v1668 = vmul.f32 1.0, %v1667
    %v1669 = vmul.f32 %v1668, 2.0
    %v1670 = vsub.f32 %v1669, 1.0
    %v1672 = vrot.slane %v1403, 7
    %v1674 = vmul.f32 %v1668, %v1672
    %1676 = vrot.lane.b32.xlu0 %v1670, 64
    %v1677 = vpop.permute.xlu0 %1676
    %v1679 = vmul.f32 %v1668, %v1677
    %1681 = vrot.lane.b32.xlu0 %v1679, 32
    %v1682 = vpop.permute.xlu0 %1681
    %v1684 = vadd.f32 %v1674, %v1682
    %v1685 = vtanh.pop %v1684
    %1687 = vrot.lane.b32.xlu0 %v1685, 64
    %v1688 = vpop.permute.xlu0 %1687
    %v1690 = vmul.f32 %v1668, %v1688
    %v1692 = vrot.slane %v1690, 5
    %1693 = vrot.lane.b32.xlu0 %v1692, 32
    %v1694 = vpop.permute.xlu0 %1693
    %v1695 = vsel %vm187, %v1694, 0
    %1697 = vmatprep.subr.mxu0 0.0
    %1698 = vmatpush1.msra.mxu0 %v89
    %1699 = vmatprep.subr.mxu0 0.0
    %1700 = vmatpush1.msra.mxu0 %v90
    %1701 = vmatprep.subr.mxu0 0.0
    %1702 = vmatpush1.msra.mxu0 %v91
    %1703 = vmatprep.subr.mxu0 0.0
    %1704 = vmatpush1.msra.mxu0 %v92
    %1705 = vmatprep.subr.mxu0 0.0
    %1706 = vmatpush1.msra.mxu0 0.0
    %1707 = vmatprep.subr.mxu0 0.0
    %1708 = vmatpush1.msra.mxu0 0.0
    %1709 = vmatprep.subr.mxu0 0.0
    %1710 = vmatpush1.msra.mxu0 0.0
    %1711 = vmatprep.subr.mxu0 0.0
    %1712 = vmatpush1.msra.mxu0 0.0
    %1713 = vmatprep.subr.mxu0 0.0
    %1714 = vmatpush1.msra.mxu0 0.0
    %1715 = vmatprep.subr.mxu0 0.0
    %1716 = vmatpush1.msra.mxu0 0.0
    %1717 = vmatprep.subr.mxu0 0.0
    %1718 = vmatpush1.msra.mxu0 0.0
    %1719 = vmatprep.subr.mxu0 0.0
    %1720 = vmatpush1.msra.mxu0 0.0
    %1721 = vmatprep.subr.mxu0 0.0
    %1722 = vmatpush1.msra.mxu0 0.0
    %1723 = vmatprep.subr.mxu0 0.0
    %1724 = vmatpush1.msra.mxu0 0.0
    %1725 = vmatprep.subr.mxu0 0.0
    %1726 = vmatpush1.msra.mxu0 0.0
    %1727 = vmatprep.subr.mxu0 0.0
    %1728 = vmatpush1.msra.mxu0 0.0
    %1729 = vmatprep.subr.mxu0 0.0
    %1730 = vmatpush1.msra.mxu0 0.0
    %1731 = vmatprep.subr.mxu0 0.0
    %1732 = vmatpush1.msra.mxu0 0.0
    %1733 = vmatprep.subr.mxu0 0.0
    %1734 = vmatpush1.msra.mxu0 0.0
    %1735 = vmatprep.subr.mxu0 0.0
    %1736 = vmatpush1.msra.mxu0 0.0
    %1737 = vmatprep.subr.mxu0 0.0
    %1738 = vmatpush1.msra.mxu0 0.0
    %1739 = vmatprep.subr.mxu0 0.0
    %1740 = vmatpush1.msra.mxu0 0.0
    %1741 = vmatprep.subr.mxu0 0.0
    %1742 = vmatpush1.msra.mxu0 0.0
    %1743 = vmatprep.subr.mxu0 0.0
    %1744 = vmatpush1.msra.mxu0 0.0
    %1745 = vmatprep.subr.mxu0 0.0
    %1746 = vmatpush1.msra.mxu0 0.0
    %1747 = vmatprep.subr.mxu0 0.0
    %1748 = vmatpush1.msra.mxu0 0.0
    %1749 = vmatprep.subr.mxu0 0.0
    %1750 = vmatpush1.msra.mxu0 0.0
    %1751 = vmatprep.subr.mxu0 0.0
    %1752 = vmatpush1.msra.mxu0 0.0
    %1753 = vmatprep.subr.mxu0 0.0
    %1754 = vmatpush1.msra.mxu0 0.0
    %1755 = vmatprep.subr.mxu0 0.0
    %1756 = vmatpush1.msra.mxu0 0.0
    %1757 = vmatprep.subr.mxu0 0.0
    %1758 = vmatpush1.msra.mxu0 0.0
    %1759 = vmatprep.subr.mxu0 0.0
    %1760 = vmatpush1.msra.mxu0 0.0
    %1761 = vmatprep.mubr.f32.mxu0 0.0
    %1762 = vmatmul.mubr.f32.gmra.mrb[0].mxu0 %v1695
    %v1763 = vpop.f32.mrb[0].mxu0
    %v1764 = vadd.f32 %v1586, %v1763
    %v1765 = vpop.f32.mrb[0].mxu0
    %1766 = vdwg.mxu0
    %v1767 = vadd.f32 %v1764, %v97
    %v1768 = vxor.u32 %v1767, 2147483648
    %v1769 = vmul.f32 %v1768, 1.442695
    %v1770 = vpow.pop %v1769
    %v1771 = vadd.f32 %v1770, 1.0
    %v1772 = vrcp.pop %v1771
    %v1773 = vmul.f32 1.0, %v1772
    %v1774 = vmul.f32 %v1773, 2.0
    %v1775 = vsub.f32 %v1774, 1.0
    %v1776 = vmul.f32 %v1773, %v1505
    %1778 = vrot.lane.b32.xlu0 %v1775, 64
    %v1779 = vpop.permute.xlu0 %1778
    %v1781 = vmul.f32 %v1773, %v1779
    %1783 = vrot.lane.b32.xlu0 %v1781, 32
    %v1784 = vpop.permute.xlu0 %1783
    %v1786 = vadd.f32 %v1776, %v1784
    %v1787 = vtanh.pop %v1786
    %1789 = vrot.lane.b32.xlu0 %v1787, 64
    %v1790 = vpop.permute.xlu0 %1789
    %v1792 = vmul.f32 %v1773, %v1790
    %1794 = vrot.lane.b32.xlu0 %v1792, 32
    %v1795 = vpop.permute.xlu0 %1794
    %1797 = vst.msk [vmem:[#allocation2 + $0x5] sm:$0x1] %vm391, %v1795
    %v1798 = vsel %vm187, %v1795, 0
    %1800 = vmatprep.subr.mxu0 0.0
    %1801 = vmatpush1.msra.mxu0 %v93
    %1802 = vmatprep.subr.mxu0 0.0
    %1803 = vmatpush1.msra.mxu0 %v94
    %1804 = vmatprep.subr.mxu0 0.0
    %1805 = vmatpush1.msra.mxu0 %v95
    %1806 = vmatprep.subr.mxu0 0.0
    %1807 = vmatpush1.msra.mxu0 %v96
    %1808 = vmatprep.subr.mxu0 0.0
    %1809 = vmatpush1.msra.mxu0 0.0
    %1810 = vmatprep.subr.mxu0 0.0
    %1811 = vmatpush1.msra.mxu0 0.0
    %1812 = vmatprep.subr.mxu0 0.0
    %1813 = vmatpush1.msra.mxu0 0.0
    %1814 = vmatprep.subr.mxu0 0.0
    %1815 = vmatpush1.msra.mxu0 0.0
    %1816 = vmatprep.subr.mxu0 0.0
    %1817 = vmatpush1.msra.mxu0 0.0
    %1818 = vmatprep.subr.mxu0 0.0
    %1819 = vmatpush1.msra.mxu0 0.0
    %1820 = vmatprep.subr.mxu0 0.0
    %1821 = vmatpush1.msra.mxu0 0.0
    %1822 = vmatprep.subr.mxu0 0.0
    %1823 = vmatpush1.msra.mxu0 0.0
    %1824 = vmatprep.subr.mxu0 0.0
    %1825 = vmatpush1.msra.mxu0 0.0
    %1826 = vmatprep.subr.mxu0 0.0
    %1827 = vmatpush1.msra.mxu0 0.0
    %1828 = vmatprep.subr.mxu0 0.0
    %1829 = vmatpush1.msra.mxu0 0.0
    %1830 = vmatprep.subr.mxu0 0.0
    %1831 = vmatpush1.msra.mxu0 0.0
    %1832 = vmatprep.subr.mxu0 0.0
    %1833 = vmatpush1.msra.mxu0 0.0
    %1834 = vmatprep.subr.mxu0 0.0
    %1835 = vmatpush1.msra.mxu0 0.0
    %1836 = vmatprep.subr.mxu0 0.0
    %1837 = vmatpush1.msra.mxu0 0.0
    %1838 = vmatprep.subr.mxu0 0.0
    %1839 = vmatpush1.msra.mxu0 0.0
    %1840 = vmatprep.subr.mxu0 0.0
    %1841 = vmatpush1.msra.mxu0 0.0
    %1842 = vmatprep.subr.mxu0 0.0
    %1843 = vmatpush1.msra.mxu0 0.0
    %1844 = vmatprep.subr.mxu0 0.0
    %1845 = vmatpush1.msra.mxu0 0.0
    %1846 = vmatprep.subr.mxu0 0.0
    %1847 = vmatpush1.msra.mxu0 0.0
    %1848 = vmatprep.subr.mxu0 0.0
    %1849 = vmatpush1.msra.mxu0 0.0
    %1850 = vmatprep.subr.mxu0 0.0
    %1851 = vmatpush1.msra.mxu0 0.0
    %1852 = vmatprep.subr.mxu0 0.0
    %1853 = vmatpush1.msra.mxu0 0.0
    %1854 = vmatprep.subr.mxu0 0.0
    %1855 = vmatpush1.msra.mxu0 0.0
    %1856 = vmatprep.subr.mxu0 0.0
    %1857 = vmatpush1.msra.mxu0 0.0
    %1858 = vmatprep.subr.mxu0 0.0
    %1859 = vmatpush1.msra.mxu0 0.0
    %1860 = vmatprep.subr.mxu0 0.0
    %1861 = vmatpush1.msra.mxu0 0.0
    %1862 = vmatprep.subr.mxu0 0.0
    %1863 = vmatpush1.msra.mxu0 0.0
    %1864 = vmatprep.mubr.f32.mxu0 0.0
    %1865 = vmatmul.mubr.f32.gmra.mrb[0].mxu0 %v1798
    %v1866 = vpop.f32.mrb[0].mxu0
    %v1867 = vadd.f32 0.0, %v1866
    %v1868 = vpop.f32.mrb[0].mxu0
    %1869 = vdwg.mxu0
    %1870 = vmatprep.subr.mxu0 0.0
    %1871 = vmatpush1.msra.mxu0 %v84
    %1872 = vmatprep.subr.mxu0 0.0
    %1873 = vmatpush1.msra.mxu0 %v85
    %1874 = vmatprep.subr.mxu0 0.0
    %1875 = vmatpush1.msra.mxu0 %v86
    %1876 = vmatprep.subr.mxu0 0.0
    %1877 = vmatpush1.msra.mxu0 %v87
    %1878 = vmatprep.subr.mxu0 0.0
    %1879 = vmatpush1.msra.mxu0 0.0
    %1880 = vmatprep.subr.mxu0 0.0
    %1881 = vmatpush1.msra.mxu0 0.0
    %1882 = vmatprep.subr.mxu0 0.0
    %1883 = vmatpush1.msra.mxu0 0.0
    %1884 = vmatprep.subr.mxu0 0.0
    %1885 = vmatpush1.msra.mxu0 0.0
    %1886 = vmatprep.subr.mxu0 0.0
    %1887 = vmatpush1.msra.mxu0 0.0
    %1888 = vmatprep.subr.mxu0 0.0
    %1889 = vmatpush1.msra.mxu0 0.0
    %1890 = vmatprep.subr.mxu0 0.0
    %1891 = vmatpush1.msra.mxu0 0.0
    %1892 = vmatprep.subr.mxu0 0.0
    %1893 = vmatpush1.msra.mxu0 0.0
    %1894 = vmatprep.subr.mxu0 0.0
    %1895 = vmatpush1.msra.mxu0 0.0
    %1896 = vmatprep.subr.mxu0 0.0
    %1897 = vmatpush1.msra.mxu0 0.0
    %1898 = vmatprep.subr.mxu0 0.0
    %1899 = vmatpush1.msra.mxu0 0.0
    %1900 = vmatprep.subr.mxu0 0.0
    %1901 = vmatpush1.msra.mxu0 0.0
    %1902 = vmatprep.subr.mxu0 0.0
    %1903 = vmatpush1.msra.mxu0 0.0
    %1904 = vmatprep.subr.mxu0 0.0
    %1905 = vmatpush1.msra.mxu0 0.0
    %1906 = vmatprep.subr.mxu0 0.0
    %1907 = vmatpush1.msra.mxu0 0.0
    %1908 = vmatprep.subr.mxu0 0.0
    %1909 = vmatpush1.msra.mxu0 0.0
    %1910 = vmatprep.subr.mxu0 0.0
    %1911 = vmatpush1.msra.mxu0 0.0
    %1912 = vmatprep.subr.mxu0 0.0
    %1913 = vmatpush1.msra.mxu0 0.0
    %1914 = vmatprep.subr.mxu0 0.0
    %1915 = vmatpush1.msra.mxu0 0.0
    %1916 = vmatprep.subr.mxu0 0.0
    %1917 = vmatpush1.msra.mxu0 0.0
    %1918 = vmatprep.subr.mxu0 0.0
    %1919 = vmatpush1.msra.mxu0 0.0
    %1920 = vmatprep.subr.mxu0 0.0
    %1921 = vmatpush1.msra.mxu0 0.0
    %1922 = vmatprep.subr.mxu0 0.0
    %1923 = vmatpush1.msra.mxu0 0.0
    %1924 = vmatprep.subr.mxu0 0.0
    %1925 = vmatpush1.msra.mxu0 0.0
    %1926 = vmatprep.subr.mxu0 0.0
    %1927 = vmatpush1.msra.mxu0 0.0
    %1928 = vmatprep.subr.mxu0 0.0
    %1929 = vmatpush1.msra.mxu0 0.0
    %1930 = vmatprep.subr.mxu0 0.0
    %1931 = vmatpush1.msra.mxu0 0.0
    %1932 = vmatprep.subr.mxu0 0.0
    %1933 = vmatpush1.msra.mxu0 0.0
    %1934 = vmatprep.mubr.f32.mxu0 0.0
    %1935 = vmatmul.mubr.f32.gmra.mrb[0].mxu0 %v1695
    %v1936 = vpop.f32.mrb[0].mxu0
    %v1937 = vadd.f32 0.0, %v1936
    %v1938 = vpop.f32.mrb[0].mxu0
    %1939 = vdwg.mxu0
    %v1941 = vrot.slane %v1937, 2
    %v1943 = vadd.f32 %v184, %v1941
    %v1944 = vxor.u32 %v1943, 2147483648
    %v1945 = vmul.f32 %v1944, 1.442695
    %v1946 = vpow.pop %v1945
    %v1947 = vadd.f32 %v1946, 1.0
    %v1948 = vrcp.pop %v1947
    %v1949 = vmul.f32 1.0, %v1948
    %v1950 = vmul.f32 %v1949, 2.0
    %v1951 = vsub.f32 %v1950, 1.0
    %v1953 = vrot.slane %v1684, 7
    %v1955 = vmul.f32 %v1949, %v1953
    %1957 = vrot.lane.b32.xlu0 %v1951, 64
    %v1958 = vpop.permute.xlu0 %1957
    %v1960 = vmul.f32 %v1949, %v1958
    %1962 = vrot.lane.b32.xlu0 %v1960, 32
    %v1963 = vpop.permute.xlu0 %1962
    %v1965 = vadd.f32 %v1955, %v1963
    %v1966 = vtanh.pop %v1965
    %1968 = vrot.lane.b32.xlu0 %v1966, 64
    %v1969 = vpop.permute.xlu0 %1968
    %v1971 = vmul.f32 %v1949, %v1969
    %v1973 = vrot.slane %v1971, 6
    %1974 = vrot.lane.b32.xlu0 %v1973, 32
    %v1975 = vpop.permute.xlu0 %1974
    %v1976 = vsel %vm187, %v1975, 0
    %1978 = vmatprep.subr.mxu0 0.0
    %1979 = vmatpush1.msra.mxu0 %v89
    %1980 = vmatprep.subr.mxu0 0.0
    %1981 = vmatpush1.msra.mxu0 %v90
    %1982 = vmatprep.subr.mxu0 0.0
    %1983 = vmatpush1.msra.mxu0 %v91
    %1984 = vmatprep.subr.mxu0 0.0
    %1985 = vmatpush1.msra.mxu0 %v92
    %1986 = vmatprep.subr.mxu0 0.0
    %1987 = vmatpush1.msra.mxu0 0.0
    %1988 = vmatprep.subr.mxu0 0.0
    %1989 = vmatpush1.msra.mxu0 0.0
    %1990 = vmatprep.subr.mxu0 0.0
    %1991 = vmatpush1.msra.mxu0 0.0
    %1992 = vmatprep.subr.mxu0 0.0
    %1993 = vmatpush1.msra.mxu0 0.0
    %1994 = vmatprep.subr.mxu0 0.0
    %1995 = vmatpush1.msra.mxu0 0.0
    %1996 = vmatprep.subr.mxu0 0.0
    %1997 = vmatpush1.msra.mxu0 0.0
    %1998 = vmatprep.subr.mxu0 0.0
    %1999 = vmatpush1.msra.mxu0 0.0
    %2000 = vmatprep.subr.mxu0 0.0
    %2001 = vmatpush1.msra.mxu0 0.0
    %2002 = vmatprep.subr.mxu0 0.0
    %2003 = vmatpush1.msra.mxu0 0.0
    %2004 = vmatprep.subr.mxu0 0.0
    %2005 = vmatpush1.msra.mxu0 0.0
    %2006 = vmatprep.subr.mxu0 0.0
    %2007 = vmatpush1.msra.mxu0 0.0
    %2008 = vmatprep.subr.mxu0 0.0
    %2009 = vmatpush1.msra.mxu0 0.0
    %2010 = vmatprep.subr.mxu0 0.0
    %2011 = vmatpush1.msra.mxu0 0.0
    %2012 = vmatprep.subr.mxu0 0.0
    %2013 = vmatpush1.msra.mxu0 0.0
    %2014 = vmatprep.subr.mxu0 0.0
    %2015 = vmatpush1.msra.mxu0 0.0
    %2016 = vmatprep.subr.mxu0 0.0
    %2017 = vmatpush1.msra.mxu0 0.0
    %2018 = vmatprep.subr.mxu0 0.0
    %2019 = vmatpush1.msra.mxu0 0.0
    %2020 = vmatprep.subr.mxu0 0.0
    %2021 = vmatpush1.msra.mxu0 0.0
    %2022 = vmatprep.subr.mxu0 0.0
    %2023 = vmatpush1.msra.mxu0 0.0
    %2024 = vmatprep.subr.mxu0 0.0
    %2025 = vmatpush1.msra.mxu0 0.0
    %2026 = vmatprep.subr.mxu0 0.0
    %2027 = vmatpush1.msra.mxu0 0.0
    %2028 = vmatprep.subr.mxu0 0.0
    %2029 = vmatpush1.msra.mxu0 0.0
    %2030 = vmatprep.subr.mxu0 0.0
    %2031 = vmatpush1.msra.mxu0 0.0
    %2032 = vmatprep.subr.mxu0 0.0
    %2033 = vmatpush1.msra.mxu0 0.0
    %2034 = vmatprep.subr.mxu0 0.0
    %2035 = vmatpush1.msra.mxu0 0.0
    %2036 = vmatprep.subr.mxu0 0.0
    %2037 = vmatpush1.msra.mxu0 0.0
    %2038 = vmatprep.subr.mxu0 0.0
    %2039 = vmatpush1.msra.mxu0 0.0
    %2040 = vmatprep.subr.mxu0 0.0
    %2041 = vmatpush1.msra.mxu0 0.0
    %2042 = vmatprep.mubr.f32.mxu0 0.0
    %2043 = vmatmul.mubr.f32.gmra.mrb[0].mxu0 %v1976
    %v2044 = vpop.f32.mrb[0].mxu0
    %v2045 = vadd.f32 %v1867, %v2044
    %v2046 = vpop.f32.mrb[0].mxu0
    %2047 = vdwg.mxu0
    %v2048 = vadd.f32 %v2045, %v97
    %v2049 = vxor.u32 %v2048, 2147483648
    %v2050 = vmul.f32 %v2049, 1.442695
    %v2051 = vpow.pop %v2050
    %v2052 = vadd.f32 %v2051, 1.0
    %v2053 = vrcp.pop %v2052
    %v2054 = vmul.f32 1.0, %v2053
    %v2055 = vmul.f32 %v2054, 2.0
    %v2056 = vsub.f32 %v2055, 1.0
    %v2057 = vmul.f32 %v2054, %v1786
    %2059 = vrot.lane.b32.xlu0 %v2056, 64
    %v2060 = vpop.permute.xlu0 %2059
    %v2062 = vmul.f32 %v2054, %v2060
    %2064 = vrot.lane.b32.xlu0 %v2062, 32
    %v2065 = vpop.permute.xlu0 %2064
    %v2067 = vadd.f32 %v2057, %v2065
    %v2068 = vtanh.pop %v2067
    %2070 = vrot.lane.b32.xlu0 %v2068, 64
    %v2071 = vpop.permute.xlu0 %2070
    %v2073 = vmul.f32 %v2054, %v2071
    %2075 = vrot.lane.b32.xlu0 %v2073, 32
    %v2076 = vpop.permute.xlu0 %2075
    %2078 = vst.msk [vmem:[#allocation2 + $0x6] sm:$0x1] %vm391, %v2076
    %v2079 = vsel %vm187, %v2076, 0
    %2081 = vmatprep.subr.mxu0 0.0
    %2082 = vmatpush1.msra.mxu0 %v93
    %2083 = vmatprep.subr.mxu0 0.0
    %2084 = vmatpush1.msra.mxu0 %v94
    %2085 = vmatprep.subr.mxu0 0.0
    %2086 = vmatpush1.msra.mxu0 %v95
    %2087 = vmatprep.subr.mxu0 0.0
    %2088 = vmatpush1.msra.mxu0 %v96
    %2089 = vmatprep.subr.mxu0 0.0
    %2090 = vmatpush1.msra.mxu0 0.0
    %2091 = vmatprep.subr.mxu0 0.0
    %2092 = vmatpush1.msra.mxu0 0.0
    %2093 = vmatprep.subr.mxu0 0.0
    %2094 = vmatpush1.msra.mxu0 0.0
    %2095 = vmatprep.subr.mxu0 0.0
    %2096 = vmatpush1.msra.mxu0 0.0
    %2097 = vmatprep.subr.mxu0 0.0
    %2098 = vmatpush1.msra.mxu0 0.0
    %2099 = vmatprep.subr.mxu0 0.0
    %2100 = vmatpush1.msra.mxu0 0.0
    %2101 = vmatprep.subr.mxu0 0.0
    %2102 = vmatpush1.msra.mxu0 0.0
    %2103 = vmatprep.subr.mxu0 0.0
    %2104 = vmatpush1.msra.mxu0 0.0
    %2105 = vmatprep.subr.mxu0 0.0
    %2106 = vmatpush1.msra.mxu0 0.0
    %2107 = vmatprep.subr.mxu0 0.0
    %2108 = vmatpush1.msra.mxu0 0.0
    %2109 = vmatprep.subr.mxu0 0.0
    %2110 = vmatpush1.msra.mxu0 0.0
    %2111 = vmatprep.subr.mxu0 0.0
    %2112 = vmatpush1.msra.mxu0 0.0
    %2113 = vmatprep.subr.mxu0 0.0
    %2114 = vmatpush1.msra.mxu0 0.0
    %2115 = vmatprep.subr.mxu0 0.0
    %2116 = vmatpush1.msra.mxu0 0.0
    %2117 = vmatprep.subr.mxu0 0.0
    %2118 = vmatpush1.msra.mxu0 0.0
    %2119 = vmatprep.subr.mxu0 0.0
    %2120 = vmatpush1.msra.mxu0 0.0
    %2121 = vmatprep.subr.mxu0 0.0
    %2122 = vmatpush1.msra.mxu0 0.0
    %2123 = vmatprep.subr.mxu0 0.0
    %2124 = vmatpush1.msra.mxu0 0.0
    %2125 = vmatprep.subr.mxu0 0.0
    %2126 = vmatpush1.msra.mxu0 0.0
    %2127 = vmatprep.subr.mxu0 0.0
    %2128 = vmatpush1.msra.mxu0 0.0
    %2129 = vmatprep.subr.mxu0 0.0
    %2130 = vmatpush1.msra.mxu0 0.0
    %2131 = vmatprep.subr.mxu0 0.0
    %2132 = vmatpush1.msra.mxu0 0.0
    %2133 = vmatprep.subr.mxu0 0.0
    %2134 = vmatpush1.msra.mxu0 0.0
    %2135 = vmatprep.subr.mxu0 0.0
    %2136 = vmatpush1.msra.mxu0 0.0
    %2137 = vmatprep.subr.mxu0 0.0
    %2138 = vmatpush1.msra.mxu0 0.0
    %2139 = vmatprep.subr.mxu0 0.0
    %2140 = vmatpush1.msra.mxu0 0.0
    %2141 = vmatprep.subr.mxu0 0.0
    %2142 = vmatpush1.msra.mxu0 0.0
    %2143 = vmatprep.subr.mxu0 0.0
    %2144 = vmatpush1.msra.mxu0 0.0
    %2145 = vmatprep.mubr.f32.mxu0 0.0
    %2146 = vmatmul.mubr.f32.gmra.mrb[0].mxu0 %v2079
    %v2147 = vpop.f32.mrb[0].mxu0
    %v2148 = vadd.f32 0.0, %v2147
    %v2149 = vpop.f32.mrb[0].mxu0
    %2150 = vdwg.mxu0
    %2151 = vmatprep.subr.mxu0 0.0
    %2152 = vmatpush1.msra.mxu0 %v84
    %2153 = vmatprep.subr.mxu0 0.0
    %2154 = vmatpush1.msra.mxu0 %v85
    %2155 = vmatprep.subr.mxu0 0.0
    %2156 = vmatpush1.msra.mxu0 %v86
    %2157 = vmatprep.subr.mxu0 0.0
    %2158 = vmatpush1.msra.mxu0 %v87
    %2159 = vmatprep.subr.mxu0 0.0
    %2160 = vmatpush1.msra.mxu0 0.0
    %2161 = vmatprep.subr.mxu0 0.0
    %2162 = vmatpush1.msra.mxu0 0.0
    %2163 = vmatprep.subr.mxu0 0.0
    %2164 = vmatpush1.msra.mxu0 0.0
    %2165 = vmatprep.subr.mxu0 0.0
    %2166 = vmatpush1.msra.mxu0 0.0
    %2167 = vmatprep.subr.mxu0 0.0
    %2168 = vmatpush1.msra.mxu0 0.0
    %2169 = vmatprep.subr.mxu0 0.0
    %2170 = vmatpush1.msra.mxu0 0.0
    %2171 = vmatprep.subr.mxu0 0.0
    %2172 = vmatpush1.msra.mxu0 0.0
    %2173 = vmatprep.subr.mxu0 0.0
    %2174 = vmatpush1.msra.mxu0 0.0
    %2175 = vmatprep.subr.mxu0 0.0
    %2176 = vmatpush1.msra.mxu0 0.0
    %2177 = vmatprep.subr.mxu0 0.0
    %2178 = vmatpush1.msra.mxu0 0.0
    %2179 = vmatprep.subr.mxu0 0.0
    %2180 = vmatpush1.msra.mxu0 0.0
    %2181 = vmatprep.subr.mxu0 0.0
    %2182 = vmatpush1.msra.mxu0 0.0
    %2183 = vmatprep.subr.mxu0 0.0
    %2184 = vmatpush1.msra.mxu0 0.0
    %2185 = vmatprep.subr.mxu0 0.0
    %2186 = vmatpush1.msra.mxu0 0.0
    %2187 = vmatprep.subr.mxu0 0.0
    %2188 = vmatpush1.msra.mxu0 0.0
    %2189 = vmatprep.subr.mxu0 0.0
    %2190 = vmatpush1.msra.mxu0 0.0
    %2191 = vmatprep.subr.mxu0 0.0
    %2192 = vmatpush1.msra.mxu0 0.0
    %2193 = vmatprep.subr.mxu0 0.0
    %2194 = vmatpush1.msra.mxu0 0.0
    %2195 = vmatprep.subr.mxu0 0.0
    %2196 = vmatpush1.msra.mxu0 0.0
    %2197 = vmatprep.subr.mxu0 0.0
    %2198 = vmatpush1.msra.mxu0 0.0
    %2199 = vmatprep.subr.mxu0 0.0
    %2200 = vmatpush1.msra.mxu0 0.0
    %2201 = vmatprep.subr.mxu0 0.0
    %2202 = vmatpush1.msra.mxu0 0.0
    %2203 = vmatprep.subr.mxu0 0.0
    %2204 = vmatpush1.msra.mxu0 0.0
    %2205 = vmatprep.subr.mxu0 0.0
    %2206 = vmatpush1.msra.mxu0 0.0
    %2207 = vmatprep.subr.mxu0 0.0
    %2208 = vmatpush1.msra.mxu0 0.0
    %2209 = vmatprep.subr.mxu0 0.0
    %2210 = vmatpush1.msra.mxu0 0.0
    %2211 = vmatprep.subr.mxu0 0.0
    %2212 = vmatpush1.msra.mxu0 0.0
    %2213 = vmatprep.subr.mxu0 0.0
    %2214 = vmatpush1.msra.mxu0 0.0
    %2215 = vmatprep.mubr.f32.mxu0 0.0
    %2216 = vmatmul.mubr.f32.gmra.mrb[0].mxu0 %v1976
    %v2217 = vpop.f32.mrb[0].mxu0
    %v2218 = vadd.f32 0.0, %v2217
    %v2219 = vpop.f32.mrb[0].mxu0
    %2220 = vdwg.mxu0
    %v2222 = vrot.slane %v2218, 1
    %v2224 = vadd.f32 %v184, %v2222
    %v2225 = vxor.u32 %v2224, 2147483648
    %v2226 = vmul.f32 %v2225, 1.442695
    %v2227 = vpow.pop %v2226
    %v2228 = vadd.f32 %v2227, 1.0
    %v2229 = vrcp.pop %v2228
    %v2230 = vmul.f32 1.0, %v2229
    %v2231 = vmul.f32 %v2230, 2.0
    %v2232 = vsub.f32 %v2231, 1.0
    %v2234 = vrot.slane %v1965, 7
    %v2236 = vmul.f32 %v2230, %v2234
    %2238 = vrot.lane.b32.xlu0 %v2232, 64
    %v2239 = vpop.permute.xlu0 %2238
    %v2241 = vmul.f32 %v2230, %v2239
    %2243 = vrot.lane.b32.xlu0 %v2241, 32
    %v2244 = vpop.permute.xlu0 %2243
    %v2246 = vadd.f32 %v2236, %v2244
    %v2247 = vtanh.pop %v2246
    %2249 = vrot.lane.b32.xlu0 %v2247, 64
    %v2250 = vpop.permute.xlu0 %2249
    %v2252 = vmul.f32 %v2230, %v2250
    %v2254 = vrot.slane %v2252, 7
    %2255 = vrot.lane.b32.xlu0 %v2254, 32
    %v2256 = vpop.permute.xlu0 %2255
    %v2257 = vsel %vm187, %v2256, 0
    %2259 = vmatprep.subr.mxu0 0.0
    %2260 = vmatpush1.msra.mxu0 %v89
    %2261 = vmatprep.subr.mxu0 0.0
    %2262 = vmatpush1.msra.mxu0 %v90
    %2263 = vmatprep.subr.mxu0 0.0
    %2264 = vmatpush1.msra.mxu0 %v91
    %2265 = vmatprep.subr.mxu0 0.0
    %2266 = vmatpush1.msra.mxu0 %v92
    %2267 = vmatprep.subr.mxu0 0.0
    %2268 = vmatpush1.msra.mxu0 0.0
    %2269 = vmatprep.subr.mxu0 0.0
    %2270 = vmatpush1.msra.mxu0 0.0
    %2271 = vmatprep.subr.mxu0 0.0
    %2272 = vmatpush1.msra.mxu0 0.0
    %2273 = vmatprep.subr.mxu0 0.0
    %2274 = vmatpush1.msra.mxu0 0.0
    %2275 = vmatprep.subr.mxu0 0.0
    %2276 = vmatpush1.msra.mxu0 0.0
    %2277 = vmatprep.subr.mxu0 0.0
    %2278 = vmatpush1.msra.mxu0 0.0
    %2279 = vmatprep.subr.mxu0 0.0
    %2280 = vmatpush1.msra.mxu0 0.0
    %2281 = vmatprep.subr.mxu0 0.0
    %2282 = vmatpush1.msra.mxu0 0.0
    %2283 = vmatprep.subr.mxu0 0.0
    %2284 = vmatpush1.msra.mxu0 0.0
    %2285 = vmatprep.subr.mxu0 0.0
    %2286 = vmatpush1.msra.mxu0 0.0
    %2287 = vmatprep.subr.mxu0 0.0
    %2288 = vmatpush1.msra.mxu0 0.0
    %2289 = vmatprep.subr.mxu0 0.0
    %2290 = vmatpush1.msra.mxu0 0.0
    %2291 = vmatprep.subr.mxu0 0.0
    %2292 = vmatpush1.msra.mxu0 0.0
    %2293 = vmatprep.subr.mxu0 0.0
    %2294 = vmatpush1.msra.mxu0 0.0
    %2295 = vmatprep.subr.mxu0 0.0
    %2296 = vmatpush1.msra.mxu0 0.0
    %2297 = vmatprep.subr.mxu0 0.0
    %2298 = vmatpush1.msra.mxu0 0.0
    %2299 = vmatprep.subr.mxu0 0.0
    %2300 = vmatpush1.msra.mxu0 0.0
    %2301 = vmatprep.subr.mxu0 0.0
    %2302 = vmatpush1.msra.mxu0 0.0
    %2303 = vmatprep.subr.mxu0 0.0
    %2304 = vmatpush1.msra.mxu0 0.0
    %2305 = vmatprep.subr.mxu0 0.0
    %2306 = vmatpush1.msra.mxu0 0.0
    %2307 = vmatprep.subr.mxu0 0.0
    %2308 = vmatpush1.msra.mxu0 0.0
    %2309 = vmatprep.subr.mxu0 0.0
    %2310 = vmatpush1.msra.mxu0 0.0
    %2311 = vmatprep.subr.mxu0 0.0
    %2312 = vmatpush1.msra.mxu0 0.0
    %2313 = vmatprep.subr.mxu0 0.0
    %2314 = vmatpush1.msra.mxu0 0.0
    %2315 = vmatprep.subr.mxu0 0.0
    %2316 = vmatpush1.msra.mxu0 0.0
    %2317 = vmatprep.subr.mxu0 0.0
    %2318 = vmatpush1.msra.mxu0 0.0
    %2319 = vmatprep.subr.mxu0 0.0
    %2320 = vmatpush1.msra.mxu0 0.0
    %2321 = vmatprep.subr.mxu0 0.0
    %2322 = vmatpush1.msra.mxu0 0.0
    %2323 = vmatprep.mubr.f32.mxu0 0.0
    %2324 = vmatmul.mubr.f32.gmra.mrb[0].mxu0 %v2257
    %v2325 = vpop.f32.mrb[0].mxu0
    %v2326 = vadd.f32 %v2148, %v2325
    %v2327 = vpop.f32.mrb[0].mxu0
    %2328 = vdwg.mxu0
    %v2329 = vadd.f32 %v2326, %v97
    %v2330 = vxor.u32 %v2329, 2147483648
    %v2331 = vmul.f32 %v2330, 1.442695
    %v2332 = vpow.pop %v2331
    %v2333 = vadd.f32 %v2332, 1.0
    %v2334 = vrcp.pop %v2333
    %v2335 = vmul.f32 1.0, %v2334
    %v2336 = vmul.f32 %v2335, 2.0
    %v2337 = vsub.f32 %v2336, 1.0
    %v2338 = vmul.f32 %v2335, %v2067
    %2340 = vrot.lane.b32.xlu0 %v2337, 64
    %v2341 = vpop.permute.xlu0 %2340
    %v2343 = vmul.f32 %v2335, %v2341
    %2345 = vrot.lane.b32.xlu0 %v2343, 32
    %v2346 = vpop.permute.xlu0 %2345
    %v2348 = vadd.f32 %v2338, %v2346
    %v2349 = vtanh.pop %v2348
    %2351 = vrot.lane.b32.xlu0 %v2349, 64
    %v2352 = vpop.permute.xlu0 %2351
    %v2354 = vmul.f32 %v2335, %v2352
    %2356 = vrot.lane.b32.xlu0 %v2354, 32
    %v2357 = vpop.permute.xlu0 %2356
    %2359 = vst.msk [vmem:[#allocation2 + $0x7] sm:$0x1] %vm391, %v2357
    %v2360 = vld [vmem:[#allocation2] sm:$0xff]
    %v2361 = vsel %vm187, %v2360, -inf
    %2362 = vmax.xlane.f32.xlu0 %v2361
    %v2363 = vpop.xlane.xlu0 %2362
    %v2364 = vsub.f32 %v2360, %v2363
    %v2365 = vmul.f32 %v2364, 1.442695
    %v2366 = vpow.pop %v2365
    %v2367 = vsel %vm187, %v2366, 0.0
    %2368 = vadd.xlane.f32.xlu0 %v2367
    %v2369 = vpop.xlane.xlu0 %2368
    %v2370 = vlog2.pop %v2369
    %v2371 = vmul.f32 %v2370, 0.6931472
    %v2372 = vsub.f32 %v2364, %v2371
    %2373 = vst.msk [vmem:[#allocation11] sm:$0xff] %vm187, %v2372
    // Predicated region
    $region46: #{tpu_custom_call.1} parent=1 // pred_check
      _
    $region47: #{tpu_custom_call.1} parent=1 // pred_check_branch
      %2375 = sbr.rel (0) target = $region49
    $region48: #{tpu_custom_call.1} parent=1 // pred_region
      %s2377 = ssub.s32 128, 128
      %2378 = vsyncadd [#allocation5], %s2377
      %s2380 = sshll.u32 [#allocation11], 4
      %s2381 = int_to_ptr.vmem [resolvable:$true] %s2380
      %2383 = dma.vmem_to_hbm [thread:$0]  %s2381, 128, %s7, [#allocation5]
    $region49: #{tpu_custom_call.1} parent=1 // pred_fallthru
      _
    // Predicated region
    $region50: #{tpu_custom_call.1} parent=1 // pred_check
      _
    $region51: #{tpu_custom_call.1} parent=1 // pred_check_branch
      %2385 = sbr.rel (0) target = $region53
    $region52: #{tpu_custom_call.1} parent=1 // pred_region
      %2386 = dma.done [#allocation5], 128
    $region53: #{tpu_custom_call.1} parent=1 // pred_fallthru
      _
    %2387 = vsyncpa [#allocation4], 1
    %2388 = vsyncpa [#allocation7], 1
    %2389 = vsyncpa [#allocation10], 1
    %2390 = vsyncpa [#allocation5], 1

</llo_original>
